<compile_context>
chip_gen: v7x
topology: tpu7x:2x2x1
jax: 0.10.0
libtpu: 0.0.40
codegen_flags: <defaults>
</compile_context>

<pallas_src>
import functools

import jax
import jax.numpy as jnp
from jax.experimental import pallas as pl
from jax.experimental.pallas import tpu as pltpu


def bottleneck_kernel(x_ref, w1_ref, b1_ref, w2c_ref, w2n_ref, b2_ref,
                      w3_ref, b3_ref, mask_ref, out_ref, tap_ref, *, W, slot):
    """One image per grid step, channels-major (C, H*W) blocks.

    x_ref   : (1, Cin, HW)       bf16 input block (NCHW image, space flattened)
    w1_ref  : (slot, Cin)        conv1 weight, BN1 scale folded, bf16
    w2c_ref : (slot, slot)       conv2 centre-tap weight, BN2 scale folded, bf16
    w2n_ref : (2, slot, 4*slot)  conv2 neighbour-tap weights (two K-chunks), bf16
    w3_ref  : (Cout, slot)       conv3 weight, BN3 scale folded, bf16
    b*_ref  : (slot|Cout, 1)     folded BN shifts, f32
    mask_ref: (8, 1, HW)         precomputed boundary-validity masks, f32
    out_ref : (1, Cout, HW)      f32 output block
    tap_ref : (2, 4*slot, HW)    bf16 im2col scratch (neighbour taps only)
    """
    x = x_ref[0]                                               # (Cin, HW) bf16

    # ---- conv1 (1x1) + bn1 shift + relu ----------------------------------
    h1 = jnp.dot(w1_ref[...], x, preferred_element_type=jnp.float32)
    h1 = jnp.maximum(h1 + b1_ref[...], 0.0)                    # pad rows stay 0
    h1b = h1.astype(jnp.bfloat16)

    # ---- conv2 (3x3, stride 1, pad 1) -------------------------------------
    # Centre tap: contracted straight from h1 (no scratch store/load).
    acc2 = jnp.dot(w2c_ref[...], h1b, preferred_element_type=jnp.float32)

    # Eight neighbour taps: per-image lane shifts of h1 with out-of-image
    # pixels zeroed by the precomputed (1, HW) masks.  Taps land in a bf16
    # scratch in two 4-tap K-chunks; each chunk's dot only depends on its own
    # stores, so the MXU overlaps with building the next chunk.
    m = 0
    for kh in range(3):
        for kw in range(3):
            if kh == 1 and kw == 1:
                continue
            s = (kh - 1) * W + (kw - 1)
            # TODO(synk): swap jnp.roll (static-shift slice+concat) for
            # pltpu.roll(h1, (-s) % HW, axis=1) (XLU rotate slot) once the
            # rotate direction is verified against jnp.roll on this toolchain.
            tap = jnp.roll(h1, -s, axis=1) * mask_ref[m]
            c, j = divmod(m, 4)
            tap_ref[c, j * slot:(j + 1) * slot, :] = tap.astype(jnp.bfloat16)
            m += 1
            if j == 3:                      # K-chunk complete -> issue MXU pass
                acc2 = acc2 + jnp.dot(w2n_ref[c], tap_ref[c],
                                      preferred_element_type=jnp.float32)
    h2 = jnp.maximum(acc2 + b2_ref[...], 0.0)

    # ---- conv3 (1x1) + bn3 shift + identity residual + relu ---------------
    h3 = jnp.dot(w3_ref[...], h2.astype(jnp.bfloat16),
                 preferred_element_type=jnp.float32)            # (Cout, HW)
    y = jnp.maximum(h3 + b3_ref[...] + x.astype(jnp.float32), 0.0)
    out_ref[...] = y[None].astype(out_ref.dtype)


@functools.partial(jax.jit, static_argnames=("W",))
def _bottleneck_pallas(x_cm, w1, b1, w2c, w2n, b2, w3, b3, mask, *, W):
    """x_cm: (N, Cin, H*W) bf16; weights pre-folded/padded/bf16 (see wrapper)."""
    N, Cin, HW = x_cm.shape
    slot = w1.shape[0]
    Cout = w3.shape[0]

    kernel = functools.partial(bottleneck_kernel, W=W, slot=slot)

    flops = 2 * N * HW * slot * (Cin + 9 * slot + Cout)
    param_bytes = int((w1.size + w2c.size + w2n.size + w3.size) * 2
                      + (b1.size + b2.size + b3.size + mask.size) * 4)
    bytes_accessed = int(N * Cin * HW * 2 + N * Cout * HW * 4 + param_bytes)

    # VMEM budget from actual block sizes: double-buffered x/out blocks and
    # params, plus the tap scratch and an f32 working-set estimate (h1/h2 and
    # h3/y slabs), with 2x headroom, clamped to v7x's 64 MiB physical VMEM.
    blk_in = Cin * HW * 2                      # bf16 x block
    blk_out = Cout * HW * 4                    # f32 out block
    scratch = 8 * slot * HW * 2                # bf16 neighbour-tap scratch
    temps = (2 * slot + 2 * Cout) * HW * 4     # f32 intermediates
    need = 2 * (blk_in + blk_out + param_bytes) + scratch + temps
    vmem_limit = int(min(max(2 * need, 16 * 1024 * 1024), 64 * 1024 * 1024))

    return pl.pallas_call(
        kernel,
        out_shape=jax.ShapeDtypeStruct((N, Cout, HW), jnp.float32),
        grid=(N,),
        in_specs=[
            pl.BlockSpec((1, Cin, HW), lambda n: (n, 0, 0)),      # x: one image
            pl.BlockSpec((slot, Cin), lambda n: (0, 0)),          # params stay
            pl.BlockSpec((slot, 1), lambda n: (0, 0)),            # VMEM-resident
            pl.BlockSpec((slot, slot), lambda n: (0, 0)),         # across the
            pl.BlockSpec((2, slot, 4 * slot), lambda n: (0, 0, 0)),  # grid
            pl.BlockSpec((slot, 1), lambda n: (0, 0)),
            pl.BlockSpec((Cout, slot), lambda n: (0, 0)),
            pl.BlockSpec((Cout, 1), lambda n: (0, 0)),
            pl.BlockSpec((8, 1, HW), lambda n: (0, 0, 0)),        # boundary masks
        ],
        out_specs=pl.BlockSpec((1, Cout, HW), lambda n: (n, 0, 0)),
        scratch_shapes=[pltpu.VMEM((2, 4 * slot, HW), jnp.bfloat16)],
        compiler_params=pltpu.CompilerParams(
            dimension_semantics=("parallel",),
            vmem_limit_bytes=vmem_limit),
        cost_estimate=pl.CostEstimate(
            flops=flops, transcendentals=0, bytes_accessed=bytes_accessed),
    )(x_cm, w1, b1, w2c, w2n, b2, w3, b3, mask)


def _fold_conv_bn(w, bn, eps=1e-5):
    """Fold eval-mode BN (running stats + affine) into the conv weight."""
    gamma, beta, mean, var = bn
    scale = gamma / jnp.sqrt(var + eps)                 # per output channel
    shift = beta - mean * scale
    w_f = w * scale.reshape((-1,) + (1,) * (w.ndim - 1))
    return w_f, shift


def bottleneck_apply(x, w1, w2, w3, bn1, bn2, bn3):
    """x: (N, Cin, H, W) NCHW f32; PyTorch-layout conv weights; eval-mode BN."""
    N, Cin, H, W = x.shape
    Cw = w1.shape[0]
    Cout = w3.shape[0]
    assert Cin == Cout, "downsample=None requires inplanes == planes * 4"
    HW = H * W
    slot = ((Cw + 15) // 16) * 16       # pad hidden channels to the bf16 sublane tile

    w1f, b1 = _fold_conv_bn(w1, bn1)    # (Cw, Cin), (Cw,)
    w2f, b2 = _fold_conv_bn(w2, bn2)    # (Cw, Cw, 3, 3), (Cw,)
    w3f, b3 = _fold_conv_bn(w3, bn3)    # (Cout, Cw), (Cout,)

    # Channel padding to `slot`: padded rows/cols (and their BN shifts) are
    # exact zeros, so the pad rows stay 0 through ReLU and contribute nothing,
    # while every scratch store / MXU operand is (16,128)-tile aligned.
    w1p = jnp.zeros((slot, Cin), jnp.float32).at[:Cw].set(w1f)
    b1p = jnp.zeros((slot, 1), jnp.float32).at[:Cw, 0].set(b1)
    b2p = jnp.zeros((slot, 1), jnp.float32).at[:Cw, 0].set(b2)
    w2cp = jnp.zeros((slot, slot), jnp.float32).at[:Cw, :Cw].set(w2f[:, :, 1, 1])
    w2np = jnp.zeros((2, slot, 4, slot), jnp.float32)
    m = 0
    for kh in range(3):                 # neighbour taps, centre (1,1) excluded
        for kw in range(3):
            if kh == 1 and kw == 1:
                continue
            c, j = divmod(m, 4)
            w2np = w2np.at[c, :Cw, j, :Cw].set(w2f[:, :, kh, kw])
            m += 1
    w2np = w2np.reshape(2, slot, 4 * slot)
    w3p = jnp.zeros((Cout, slot), jnp.float32).at[:, :Cw].set(w3f)
    b3p = b3.reshape(Cout, 1)

    # bf16 MXU operands (f32 accumulation inside the kernel).
    w1p, w2cp, w2np, w3p = (a.astype(jnp.bfloat16) for a in (w1p, w2cp, w2np, w3p))

    # Precomputed boundary-validity masks for the 8 neighbour taps (image
    # independent) -> no integer // and % inside the kernel hot path.
    lane = jnp.arange(HW, dtype=jnp.int32)
    row, col = lane // W, lane % W
    masks = []
    for kh in range(3):
        for kw in range(3):
            if kh == 1 and kw == 1:
                continue
            sh, sw = kh - 1, kw - 1
            masks.append((row + sh >= 0) & (row + sh < H) &
                         (col + sw >= 0) & (col + sw < W))
    mask = jnp.stack(masks).astype(jnp.float32).reshape(8, 1, HW)

    # NCHW is already channels x pixels; cross HBM in bf16 to halve input DMA.
    x_cm = x.reshape(N, Cin, HW).astype(jnp.bfloat16)
    out = _bottleneck_pallas(x_cm, w1p, b1p, w2cp, w2np, b2p, w3p, b3p, mask, W=W)
    return out.reshape(N, Cout, H, W)


def _reference_bottleneck(x, w1, w2, w3, bn1, bn2, bn3, eps=1e-5):
    """Pure-JAX f32 reference of the PyTorch forward (eval-mode BN), NCHW."""
    dn = ("NCHW", "OIHW", "NCHW")

    def bn(h, params):
        gamma, beta, mean, var = params
        s = gamma / jnp.sqrt(var + eps)
        b = beta - mean * s
        return h * s[None, :, None, None] + b[None, :, None, None]

    h = jax.lax.conv_general_dilated(x, w1[:, :, None, None], (1, 1), "VALID",
                                     dimension_numbers=dn)
    h = jnp.maximum(bn(h, bn1), 0.0)
    h = jax.lax.conv_general_dilated(h, w2, (1, 1), ((1, 1), (1, 1)),
                                     dimension_numbers=dn)
    h = jnp.maximum(bn(h, bn2), 0.0)
    h = jax.lax.conv_general_dilated(h, w3[:, :, None, None], (1, 1), "VALID",
                                     dimension_numbers=dn)
    h = bn(h, bn3)
    return jnp.maximum(h + x, 0.0)


def _rand_bn(key, c):
    k1, k2, k3, k4 = jax.random.split(key, 4)
    gamma = 1.0 + 0.1 * jax.random.normal(k1, (c,), jnp.float32)
    beta = 0.1 * jax.random.normal(k2, (c,), jnp.float32)
    mean = 0.1 * jax.random.normal(k3, (c,), jnp.float32)
    var = jax.random.uniform(k4, (c,), jnp.float32, minval=0.5, maxval=1.5)
    return gamma, beta, mean, var


if __name__ == "__main__":
    key = jax.random.PRNGKey(0)
    keys = jax.random.split(key, 8)

    # Bottleneck(inplanes=16, planes=4, dims=2): width=4, out=planes*4=16=inplanes
    N, H, W = 2, 16, 16
    inplanes, planes = 16, 4
    base_width, groups = 64, 1
    width = int(planes * (base_width / 64.0)) * groups
    Cout = planes * 4
    assert Cout == inplanes      # identity residual (downsample is None)

    # Deterministic synthetic parameters in PyTorch layouts.
    x = jax.random.normal(keys[0], (N, inplanes, H, W), jnp.float32)
    w1 = 0.2 * jax.random.normal(keys[1], (width, inplanes), jnp.float32)       # conv1 (out, in)
    w2 = 0.2 * jax.random.normal(keys[2], (width, width, 3, 3), jnp.float32)    # conv2 OIHW
    w3 = 0.2 * jax.random.normal(keys[3], (Cout, width), jnp.float32)           # conv3 (out, in)
    bn1 = _rand_bn(keys[4], width)
    bn2 = _rand_bn(keys[5], width)
    bn3 = _rand_bn(keys[6], Cout)

    out = bottleneck_apply(x, w1, w2, w3, bn1, bn2, bn3)
    jax.block_until_ready(out)

    ref = _reference_bottleneck(x, w1, w2, w3, bn1, bn2, bn3)
    err_max = float(jnp.max(jnp.abs(out - ref)))
    err_mean = float(jnp.mean(jnp.abs(out - ref)))
    # bf16 operands (weights + boundary activations) with f32 accumulation,
    # compounded through three chained convs: bulk statistics must be tight,
    # individual elements may carry a few-percent rounding error.
    assert err_mean < 2e-2, f"mean abs err {err_mean}"
    assert jnp.allclose(out, ref, atol=8e-2, rtol=8e-2), \
        f"max abs err {err_max}, mean abs err {err_mean}"
    print("KERNEL_OK")
</pallas_src>

<mosaic_0001>
module attributes {stable_mosaic.version = 11 : i64} {
  func.func @bottleneck_kernel(%arg0: i32, %arg1: memref<1x16x256xbf16, #tpu.memory_space<vmem>>, %arg2: memref<16x16xbf16, #tpu.memory_space<vmem>>, %arg3: memref<16x1xf32, #tpu.memory_space<vmem>>, %arg4: memref<16x16xbf16, #tpu.memory_space<vmem>>, %arg5: memref<2x16x64xbf16, #tpu.memory_space<vmem>>, %arg6: memref<16x1xf32, #tpu.memory_space<vmem>>, %arg7: memref<16x16xbf16, #tpu.memory_space<vmem>>, %arg8: memref<16x1xf32, #tpu.memory_space<vmem>>, %arg9: memref<8x1x256xf32, #tpu.memory_space<vmem>>, %arg10: memref<1x16x256xf32, #tpu.memory_space<vmem>>, %arg11: memref<2x64x256xbf16, #tpu.memory_space<vmem>>) attributes {dimension_semantics = [#tpu.dimension_semantics<parallel>], iteration_bounds = array<i64: 2>, scalar_prefetch = 0 : i64, scratch_operands = 1 : i64, tpu.core_type = #tpu.core_type<tc>, window_params = [{transform_indices = @transform_0, window_bounds = array<i64: 1, 16, 256>}, {pipeline_mode = #tpu.pipeline_mode<synchronous>, transform_indices = @transform_1, window_bounds = array<i64: 16, 16>}, {pipeline_mode = #tpu.pipeline_mode<synchronous>, transform_indices = @transform_2, window_bounds = array<i64: 16, 1>}, {pipeline_mode = #tpu.pipeline_mode<synchronous>, transform_indices = @transform_3, window_bounds = array<i64: 16, 16>}, {pipeline_mode = #tpu.pipeline_mode<synchronous>, transform_indices = @transform_4, window_bounds = array<i64: 2, 16, 64>}, {pipeline_mode = #tpu.pipeline_mode<synchronous>, transform_indices = @transform_5, window_bounds = array<i64: 16, 1>}, {pipeline_mode = #tpu.pipeline_mode<synchronous>, transform_indices = @transform_6, window_bounds = array<i64: 16, 16>}, {pipeline_mode = #tpu.pipeline_mode<synchronous>, transform_indices = @transform_7, window_bounds = array<i64: 16, 1>}, {pipeline_mode = #tpu.pipeline_mode<synchronous>, transform_indices = @transform_8, window_bounds = array<i64: 8, 1, 256>}, {transform_indices = @transform_9, window_bounds = array<i64: 1, 16, 256>}]} {
    %c0 = arith.constant 0 : index
    %c0_0 = arith.constant 0 : index
    %c0_1 = arith.constant 0 : index
    %0 = vector.load %arg1[%c0, %c0_0, %c0_1] : memref<1x16x256xbf16, #tpu.memory_space<vmem>>, vector<1x16x256xbf16>
    %1 = vector.shape_cast %0 : vector<1x16x256xbf16> to vector<16x256xbf16>
    %c0_2 = arith.constant 0 : index
    %c0_3 = arith.constant 0 : index
    %2 = vector.load %arg2[%c0_2, %c0_3] : memref<16x16xbf16, #tpu.memory_space<vmem>>, vector<16x16xbf16>
    %cst = arith.constant dense<0.000000e+00> : vector<16x256xf32>
    %3 = tpu.matmul %2, %1, %cst {dimension_numbers = #tpu.dot_dimension_numbers<[1], [0], [0], [1], [0, 0, 1, 1], [], []>} : vector<16x16xbf16>, vector<16x256xbf16>, vector<16x256xf32> -> vector<16x256xf32>
    %c0_4 = arith.constant 0 : index
    %c0_5 = arith.constant 0 : index
    %4 = vector.load %arg3[%c0_4, %c0_5] : memref<16x1xf32, #tpu.memory_space<vmem>>, vector<16x1xf32>
    %5 = vector.broadcast %4 : vector<16x1xf32> to vector<16x256xf32>
    %6 = arith.addf %3, %5 : vector<16x256xf32>
    %cst_6 = arith.constant 0.000000e+00 : f32
    %7 = vector.broadcast %cst_6 : f32 to vector<16x256xf32>
    %8 = arith.maximumf %6, %7 : vector<16x256xf32>
    %9 = arith.truncf %8 : vector<16x256xf32> to vector<16x256xbf16>
    %c0_7 = arith.constant 0 : index
    %c0_8 = arith.constant 0 : index
    %10 = vector.load %arg4[%c0_7, %c0_8] : memref<16x16xbf16, #tpu.memory_space<vmem>>, vector<16x16xbf16>
    %cst_9 = arith.constant dense<0.000000e+00> : vector<16x256xf32>
    %11 = tpu.matmul %10, %9, %cst_9 {dimension_numbers = #tpu.dot_dimension_numbers<[1], [0], [0], [1], [0, 0, 1, 1], [], []>} : vector<16x16xbf16>, vector<16x256xbf16>, vector<16x256xf32> -> vector<16x256xf32>
    %12 = vector.extract_strided_slice %8 {offsets = [0, 239], sizes = [16, 17], strides = [1, 1]} : vector<16x256xf32> to vector<16x17xf32>
    %13 = vector.extract_strided_slice %8 {offsets = [0, 0], sizes = [16, 239], strides = [1, 1]} : vector<16x256xf32> to vector<16x239xf32>
    %14 = tpu.concatenate %12, %13 in 1 : vector<16x17xf32>, vector<16x239xf32> -> vector<16x256xf32>
    %c0_10 = arith.constant 0 : index
    %c0_11 = arith.constant 0 : index
    %c0_12 = arith.constant 0 : index
    %15 = vector.load %arg9[%c0_10, %c0_11, %c0_12] : memref<8x1x256xf32, #tpu.memory_space<vmem>>, vector<1x1x256xf32>
    %16 = vector.shape_cast %15 : vector<1x1x256xf32> to vector<1x256xf32>
    %17 = vector.broadcast %16 : vector<1x256xf32> to vector<16x256xf32>
    %18 = arith.mulf %14, %17 : vector<16x256xf32>
    %19 = arith.truncf %18 : vector<16x256xf32> to vector<16x256xbf16>
    %c0_13 = arith.constant 0 : index
    %c0_14 = arith.constant 0 : index
    %c0_15 = arith.constant 0 : index
    %20 = vector.load %arg11[%c0_13, %c0_14, %c0_15] : memref<2x64x256xbf16, #tpu.memory_space<vmem>>, vector<1x16x256xbf16>
    %21 = vector.shape_cast %20 : vector<1x16x256xbf16> to vector<16x256xbf16>
    %22 = vector.shape_cast %19 : vector<16x256xbf16> to vector<1x16x256xbf16>
    tpu.vector_store %arg11[%c0_13, %c0_14, %c0_15], %22 {strides = array<i32>} : memref<2x64x256xbf16, #tpu.memory_space<vmem>>, vector<1x16x256xbf16>,
    %23 = vector.extract_strided_slice %8 {offsets = [0, 240], sizes = [16, 16], strides = [1, 1]} : vector<16x256xf32> to vector<16x16xf32>
    %24 = vector.extract_strided_slice %8 {offsets = [0, 0], sizes = [16, 240], strides = [1, 1]} : vector<16x256xf32> to vector<16x240xf32>
    %25 = tpu.concatenate %23, %24 in 1 : vector<16x16xf32>, vector<16x240xf32> -> vector<16x256xf32>
    %c1 = arith.constant 1 : index
    %c0_16 = arith.constant 0 : index
    %c0_17 = arith.constant 0 : index
    %26 = vector.load %arg9[%c1, %c0_16, %c0_17] : memref<8x1x256xf32, #tpu.memory_space<vmem>>, vector<1x1x256xf32>
    %27 = vector.shape_cast %26 : vector<1x1x256xf32> to vector<1x256xf32>
    %28 = vector.broadcast %27 : vector<1x256xf32> to vector<16x256xf32>
    %29 = arith.mulf %25, %28 : vector<16x256xf32>
    %30 = arith.truncf %29 : vector<16x256xf32> to vector<16x256xbf16>
    %c0_18 = arith.constant 0 : index
    %c16 = arith.constant 16 : index
    %c0_19 = arith.constant 0 : index
    %31 = vector.load %arg11[%c0_18, %c16, %c0_19] : memref<2x64x256xbf16, #tpu.memory_space<vmem>>, vector<1x16x256xbf16>
    %32 = vector.shape_cast %31 : vector<1x16x256xbf16> to vector<16x256xbf16>
    %33 = vector.shape_cast %30 : vector<16x256xbf16> to vector<1x16x256xbf16>
    tpu.vector_store %arg11[%c0_18, %c16, %c0_19], %33 {strides = array<i32>} : memref<2x64x256xbf16, #tpu.memory_space<vmem>>, vector<1x16x256xbf16>,
    %34 = vector.extract_strided_slice %8 {offsets = [0, 241], sizes = [16, 15], strides = [1, 1]} : vector<16x256xf32> to vector<16x15xf32>
    %35 = vector.extract_strided_slice %8 {offsets = [0, 0], sizes = [16, 241], strides = [1, 1]} : vector<16x256xf32> to vector<16x241xf32>
    %36 = tpu.concatenate %34, %35 in 1 : vector<16x15xf32>, vector<16x241xf32> -> vector<16x256xf32>
    %c2 = arith.constant 2 : index
    %c0_20 = arith.constant 0 : index
    %c0_21 = arith.constant 0 : index
    %37 = vector.load %arg9[%c2, %c0_20, %c0_21] : memref<8x1x256xf32, #tpu.memory_space<vmem>>, vector<1x1x256xf32>
    %38 = vector.shape_cast %37 : vector<1x1x256xf32> to vector<1x256xf32>
    %39 = vector.broadcast %38 : vector<1x256xf32> to vector<16x256xf32>
    %40 = arith.mulf %36, %39 : vector<16x256xf32>
    %41 = arith.truncf %40 : vector<16x256xf32> to vector<16x256xbf16>
    %c0_22 = arith.constant 0 : index
    %c32 = arith.constant 32 : index
    %c0_23 = arith.constant 0 : index
    %42 = vector.load %arg11[%c0_22, %c32, %c0_23] : memref<2x64x256xbf16, #tpu.memory_space<vmem>>, vector<1x16x256xbf16>
    %43 = vector.shape_cast %42 : vector<1x16x256xbf16> to vector<16x256xbf16>
    %44 = vector.shape_cast %41 : vector<16x256xbf16> to vector<1x16x256xbf16>
    tpu.vector_store %arg11[%c0_22, %c32, %c0_23], %44 {strides = array<i32>} : memref<2x64x256xbf16, #tpu.memory_space<vmem>>, vector<1x16x256xbf16>,
    %45 = vector.extract_strided_slice %8 {offsets = [0, 255], sizes = [16, 1], strides = [1, 1]} : vector<16x256xf32> to vector<16x1xf32>
    %46 = vector.extract_strided_slice %8 {offsets = [0, 0], sizes = [16, 255], strides = [1, 1]} : vector<16x256xf32> to vector<16x255xf32>
    %47 = tpu.concatenate %45, %46 in 1 : vector<16x1xf32>, vector<16x255xf32> -> vector<16x256xf32>
    %c3 = arith.constant 3 : index
    %c0_24 = arith.constant 0 : index
    %c0_25 = arith.constant 0 : index
    %48 = vector.load %arg9[%c3, %c0_24, %c0_25] : memref<8x1x256xf32, #tpu.memory_space<vmem>>, vector<1x1x256xf32>
    %49 = vector.shape_cast %48 : vector<1x1x256xf32> to vector<1x256xf32>
    %50 = vector.broadcast %49 : vector<1x256xf32> to vector<16x256xf32>
    %51 = arith.mulf %47, %50 : vector<16x256xf32>
    %52 = arith.truncf %51 : vector<16x256xf32> to vector<16x256xbf16>
    %c0_26 = arith.constant 0 : index
    %c48 = arith.constant 48 : index
    %c0_27 = arith.constant 0 : index
    %53 = vector.load %arg11[%c0_26, %c48, %c0_27] : memref<2x64x256xbf16, #tpu.memory_space<vmem>>, vector<1x16x256xbf16>
    %54 = vector.shape_cast %53 : vector<1x16x256xbf16> to vector<16x256xbf16>
    %55 = vector.shape_cast %52 : vector<16x256xbf16> to vector<1x16x256xbf16>
    tpu.vector_store %arg11[%c0_26, %c48, %c0_27], %55 {strides = array<i32>} : memref<2x64x256xbf16, #tpu.memory_space<vmem>>, vector<1x16x256xbf16>,
    %c0_28 = arith.constant 0 : index
    %c0_29 = arith.constant 0 : index
    %c0_30 = arith.constant 0 : index
    %56 = vector.load %arg5[%c0_28, %c0_29, %c0_30] : memref<2x16x64xbf16, #tpu.memory_space<vmem>>, vector<1x16x64xbf16>
    %57 = vector.shape_cast %56 : vector<1x16x64xbf16> to vector<16x64xbf16>
    %c0_31 = arith.constant 0 : index
    %c0_32 = arith.constant 0 : index
    %c0_33 = arith.constant 0 : index
    %58 = vector.load %arg11[%c0_31, %c0_32, %c0_33] : memref<2x64x256xbf16, #tpu.memory_space<vmem>>, vector<1x64x256xbf16>
    %59 = vector.shape_cast %58 : vector<1x64x256xbf16> to vector<64x256xbf16>
    %cst_34 = arith.constant dense<0.000000e+00> : vector<16x256xf32>
    %60 = tpu.matmul %57, %59, %cst_34 {dimension_numbers = #tpu.dot_dimension_numbers<[1], [0], [0], [1], [0, 0, 1, 1], [], []>} : vector<16x64xbf16>, vector<64x256xbf16>, vector<16x256xf32> -> vector<16x256xf32>
    %61 = arith.addf %11, %60 : vector<16x256xf32>
    %62 = vector.extract_strided_slice %8 {offsets = [0, 1], sizes = [16, 255], strides = [1, 1]} : vector<16x256xf32> to vector<16x255xf32>
    %63 = vector.extract_strided_slice %8 {offsets = [0, 0], sizes = [16, 1], strides = [1, 1]} : vector<16x256xf32> to vector<16x1xf32>
    %64 = tpu.concatenate %62, %63 in 1 : vector<16x255xf32>, vector<16x1xf32> -> vector<16x256xf32>
    %c4 = arith.constant 4 : index
    %c0_35 = arith.constant 0 : index
    %c0_36 = arith.constant 0 : index
    %65 = vector.load %arg9[%c4, %c0_35, %c0_36] : memref<8x1x256xf32, #tpu.memory_space<vmem>>, vector<1x1x256xf32>
    %66 = vector.shape_cast %65 : vector<1x1x256xf32> to vector<1x256xf32>
    %67 = vector.broadcast %66 : vector<1x256xf32> to vector<16x256xf32>
    %68 = arith.mulf %64, %67 : vector<16x256xf32>
    %69 = arith.truncf %68 : vector<16x256xf32> to vector<16x256xbf16>
    %c1_37 = arith.constant 1 : index
    %c0_38 = arith.constant 0 : index
    %c0_39 = arith.constant 0 : index
    %70 = vector.load %arg11[%c1_37, %c0_38, %c0_39] : memref<2x64x256xbf16, #tpu.memory_space<vmem>>, vector<1x16x256xbf16>
    %71 = vector.shape_cast %70 : vector<1x16x256xbf16> to vector<16x256xbf16>
    %72 = vector.shape_cast %69 : vector<16x256xbf16> to vector<1x16x256xbf16>
    tpu.vector_store %arg11[%c1_37, %c0_38, %c0_39], %72 {strides = array<i32>} : memref<2x64x256xbf16, #tpu.memory_space<vmem>>, vector<1x16x256xbf16>,
    %73 = vector.extract_strided_slice %8 {offsets = [0, 15], sizes = [16, 241], strides = [1, 1]} : vector<16x256xf32> to vector<16x241xf32>
    %74 = vector.extract_strided_slice %8 {offsets = [0, 0], sizes = [16, 15], strides = [1, 1]} : vector<16x256xf32> to vector<16x15xf32>
    %75 = tpu.concatenate %73, %74 in 1 : vector<16x241xf32>, vector<16x15xf32> -> vector<16x256xf32>
    %c5 = arith.constant 5 : index
    %c0_40 = arith.constant 0 : index
    %c0_41 = arith.constant 0 : index
    %76 = vector.load %arg9[%c5, %c0_40, %c0_41] : memref<8x1x256xf32, #tpu.memory_space<vmem>>, vector<1x1x256xf32>
    %77 = vector.shape_cast %76 : vector<1x1x256xf32> to vector<1x256xf32>
    %78 = vector.broadcast %77 : vector<1x256xf32> to vector<16x256xf32>
    %79 = arith.mulf %75, %78 : vector<16x256xf32>
    %80 = arith.truncf %79 : vector<16x256xf32> to vector<16x256xbf16>
    %c1_42 = arith.constant 1 : index
    %c16_43 = arith.constant 16 : index
    %c0_44 = arith.constant 0 : index
    %81 = vector.load %arg11[%c1_42, %c16_43, %c0_44] : memref<2x64x256xbf16, #tpu.memory_space<vmem>>, vector<1x16x256xbf16>
    %82 = vector.shape_cast %81 : vector<1x16x256xbf16> to vector<16x256xbf16>
    %83 = vector.shape_cast %80 : vector<16x256xbf16> to vector<1x16x256xbf16>
    tpu.vector_store %arg11[%c1_42, %c16_43, %c0_44], %83 {strides = array<i32>} : memref<2x64x256xbf16, #tpu.memory_space<vmem>>, vector<1x16x256xbf16>,
    %84 = vector.extract_strided_slice %8 {offsets = [0, 16], sizes = [16, 240], strides = [1, 1]} : vector<16x256xf32> to vector<16x240xf32>
    %85 = vector.extract_strided_slice %8 {offsets = [0, 0], sizes = [16, 16], strides = [1, 1]} : vector<16x256xf32> to vector<16x16xf32>
    %86 = tpu.concatenate %84, %85 in 1 : vector<16x240xf32>, vector<16x16xf32> -> vector<16x256xf32>
    %c6 = arith.constant 6 : index
    %c0_45 = arith.constant 0 : index
    %c0_46 = arith.constant 0 : index
    %87 = vector.load %arg9[%c6, %c0_45, %c0_46] : memref<8x1x256xf32, #tpu.memory_space<vmem>>, vector<1x1x256xf32>
    %88 = vector.shape_cast %87 : vector<1x1x256xf32> to vector<1x256xf32>
    %89 = vector.broadcast %88 : vector<1x256xf32> to vector<16x256xf32>
    %90 = arith.mulf %86, %89 : vector<16x256xf32>
    %91 = arith.truncf %90 : vector<16x256xf32> to vector<16x256xbf16>
    %c1_47 = arith.constant 1 : index
    %c32_48 = arith.constant 32 : index
    %c0_49 = arith.constant 0 : index
    %92 = vector.load %arg11[%c1_47, %c32_48, %c0_49] : memref<2x64x256xbf16, #tpu.memory_space<vmem>>, vector<1x16x256xbf16>
    %93 = vector.shape_cast %92 : vector<1x16x256xbf16> to vector<16x256xbf16>
    %94 = vector.shape_cast %91 : vector<16x256xbf16> to vector<1x16x256xbf16>
    tpu.vector_store %arg11[%c1_47, %c32_48, %c0_49], %94 {strides = array<i32>} : memref<2x64x256xbf16, #tpu.memory_space<vmem>>, vector<1x16x256xbf16>,
    %95 = vector.extract_strided_slice %8 {offsets = [0, 17], sizes = [16, 239], strides = [1, 1]} : vector<16x256xf32> to vector<16x239xf32>
    %96 = vector.extract_strided_slice %8 {offsets = [0, 0], sizes = [16, 17], strides = [1, 1]} : vector<16x256xf32> to vector<16x17xf32>
    %97 = tpu.concatenate %95, %96 in 1 : vector<16x239xf32>, vector<16x17xf32> -> vector<16x256xf32>
    %c7 = arith.constant 7 : index
    %c0_50 = arith.constant 0 : index
    %c0_51 = arith.constant 0 : index
    %98 = vector.load %arg9[%c7, %c0_50, %c0_51] : memref<8x1x256xf32, #tpu.memory_space<vmem>>, vector<1x1x256xf32>
    %99 = vector.shape_cast %98 : vector<1x1x256xf32> to vector<1x256xf32>
    %100 = vector.broadcast %99 : vector<1x256xf32> to vector<16x256xf32>
    %101 = arith.mulf %97, %100 : vector<16x256xf32>
    %102 = arith.truncf %101 : vector<16x256xf32> to vector<16x256xbf16>
    %c1_52 = arith.constant 1 : index
    %c48_53 = arith.constant 48 : index
    %c0_54 = arith.constant 0 : index
    %103 = vector.load %arg11[%c1_52, %c48_53, %c0_54] : memref<2x64x256xbf16, #tpu.memory_space<vmem>>, vector<1x16x256xbf16>
    %104 = vector.shape_cast %103 : vector<1x16x256xbf16> to vector<16x256xbf16>
    %105 = vector.shape_cast %102 : vector<16x256xbf16> to vector<1x16x256xbf16>
    tpu.vector_store %arg11[%c1_52, %c48_53, %c0_54], %105 {strides = array<i32>} : memref<2x64x256xbf16, #tpu.memory_space<vmem>>, vector<1x16x256xbf16>,
    %c1_55 = arith.constant 1 : index
    %c0_56 = arith.constant 0 : index
    %c0_57 = arith.constant 0 : index
    %106 = vector.load %arg5[%c1_55, %c0_56, %c0_57] : memref<2x16x64xbf16, #tpu.memory_space<vmem>>, vector<1x16x64xbf16>
    %107 = vector.shape_cast %106 : vector<1x16x64xbf16> to vector<16x64xbf16>
    %c1_58 = arith.constant 1 : index
    %c0_59 = arith.constant 0 : index
    %c0_60 = arith.constant 0 : index
    %108 = vector.load %arg11[%c1_58, %c0_59, %c0_60] : memref<2x64x256xbf16, #tpu.memory_space<vmem>>, vector<1x64x256xbf16>
    %109 = vector.shape_cast %108 : vector<1x64x256xbf16> to vector<64x256xbf16>
    %cst_61 = arith.constant dense<0.000000e+00> : vector<16x256xf32>
    %110 = tpu.matmul %107, %109, %cst_61 {dimension_numbers = #tpu.dot_dimension_numbers<[1], [0], [0], [1], [0, 0, 1, 1], [], []>} : vector<16x64xbf16>, vector<64x256xbf16>, vector<16x256xf32> -> vector<16x256xf32>
    %111 = arith.addf %61, %110 : vector<16x256xf32>
    %c0_62 = arith.constant 0 : index
    %c0_63 = arith.constant 0 : index
    %112 = vector.load %arg6[%c0_62, %c0_63] : memref<16x1xf32, #tpu.memory_space<vmem>>, vector<16x1xf32>
    %113 = vector.broadcast %112 : vector<16x1xf32> to vector<16x256xf32>
    %114 = arith.addf %111, %113 : vector<16x256xf32>
    %cst_64 = arith.constant 0.000000e+00 : f32
    %115 = vector.broadcast %cst_64 : f32 to vector<16x256xf32>
    %116 = arith.maximumf %114, %115 : vector<16x256xf32>
    %c0_65 = arith.constant 0 : index
    %c0_66 = arith.constant 0 : index
    %117 = vector.load %arg7[%c0_65, %c0_66] : memref<16x16xbf16, #tpu.memory_space<vmem>>, vector<16x16xbf16>
    %118 = arith.truncf %116 : vector<16x256xf32> to vector<16x256xbf16>
    %cst_67 = arith.constant dense<0.000000e+00> : vector<16x256xf32>
    %119 = tpu.matmul %117, %118, %cst_67 {dimension_numbers = #tpu.dot_dimension_numbers<[1], [0], [0], [1], [0, 0, 1, 1], [], []>} : vector<16x16xbf16>, vector<16x256xbf16>, vector<16x256xf32> -> vector<16x256xf32>
    %c0_68 = arith.constant 0 : index
    %c0_69 = arith.constant 0 : index
    %120 = vector.load %arg8[%c0_68, %c0_69] : memref<16x1xf32, #tpu.memory_space<vmem>>, vector<16x1xf32>
    %121 = vector.broadcast %120 : vector<16x1xf32> to vector<16x256xf32>
    %122 = arith.addf %119, %121 : vector<16x256xf32>
    %123 = arith.extf %1 : vector<16x256xbf16> to vector<16x256xf32>
    %124 = arith.addf %122, %123 : vector<16x256xf32>
    %cst_70 = arith.constant 0.000000e+00 : f32
    %125 = vector.broadcast %cst_70 : f32 to vector<16x256xf32>
    %126 = arith.maximumf %124, %125 : vector<16x256xf32>
    %127 = vector.shape_cast %126 : vector<16x256xf32> to vector<1x16x256xf32>
    %c0_71 = arith.constant 0 : index
    %c0_72 = arith.constant 0 : index
    %c0_73 = arith.constant 0 : index
    %128 = vector.load %arg10[%c0_71, %c0_72, %c0_73] : memref<1x16x256xf32, #tpu.memory_space<vmem>>, vector<1x16x256xf32>
    tpu.vector_store %arg10[%c0_71, %c0_72, %c0_73], %127 {strides = array<i32>} : memref<1x16x256xf32, #tpu.memory_space<vmem>>, vector<1x16x256xf32>,
    return
  }
  func.func @transform_0(%arg0: i32) -> (i32, i32, i32) {
    %c0_i32 = arith.constant 0 : i32
    %c0_i32_0 = arith.constant 0 : i32
    %c0_i32_1 = arith.constant 0 : i32
    return %arg0, %c0_i32, %c0_i32_0 : i32, i32, i32
  }
  func.func @transform_1(%arg0: i32) -> (i32, i32) {
    %c0_i32 = arith.constant 0 : i32
    %c0_i32_0 = arith.constant 0 : i32
    %c0_i32_1 = arith.constant 0 : i32
    return %c0_i32, %c0_i32_0 : i32, i32
  }
  func.func @transform_2(%arg0: i32) -> (i32, i32) {
    %c0_i32 = arith.constant 0 : i32
    %c0_i32_0 = arith.constant 0 : i32
    %c0_i32_1 = arith.constant 0 : i32
    return %c0_i32, %c0_i32_0 : i32, i32
  }
  func.func @transform_3(%arg0: i32) -> (i32, i32) {
    %c0_i32 = arith.constant 0 : i32
    %c0_i32_0 = arith.constant 0 : i32
    %c0_i32_1 = arith.constant 0 : i32
    return %c0_i32, %c0_i32_0 : i32, i32
  }
  func.func @transform_4(%arg0: i32) -> (i32, i32, i32) {
    %c0_i32 = arith.constant 0 : i32
    %c0_i32_0 = arith.constant 0 : i32
    %c0_i32_1 = arith.constant 0 : i32
    %c0_i32_2 = arith.constant 0 : i32
    return %c0_i32, %c0_i32_0, %c0_i32_1 : i32, i32, i32
  }
  func.func @transform_5(%arg0: i32) -> (i32, i32) {
    %c0_i32 = arith.constant 0 : i32
    %c0_i32_0 = arith.constant 0 : i32
    %c0_i32_1 = arith.constant 0 : i32
    return %c0_i32, %c0_i32_0 : i32, i32
  }
  func.func @transform_6(%arg0: i32) -> (i32, i32) {
    %c0_i32 = arith.constant 0 : i32
    %c0_i32_0 = arith.constant 0 : i32
    %c0_i32_1 = arith.constant 0 : i32
    return %c0_i32, %c0_i32_0 : i32, i32
  }
  func.func @transform_7(%arg0: i32) -> (i32, i32) {
    %c0_i32 = arith.constant 0 : i32
    %c0_i32_0 = arith.constant 0 : i32
    %c0_i32_1 = arith.constant 0 : i32
    return %c0_i32, %c0_i32_0 : i32, i32
  }
  func.func @transform_8(%arg0: i32) -> (i32, i32, i32) {
    %c0_i32 = arith.constant 0 : i32
    %c0_i32_0 = arith.constant 0 : i32
    %c0_i32_1 = arith.constant 0 : i32
    %c0_i32_2 = arith.constant 0 : i32
    return %c0_i32, %c0_i32_0, %c0_i32_1 : i32, i32, i32
  }
  func.func @transform_9(%arg0: i32) -> (i32, i32, i32) {
    %c0_i32 = arith.constant 0 : i32
    %c0_i32_0 = arith.constant 0 : i32
    %c0_i32_1 = arith.constant 0 : i32
    return %arg0, %c0_i32, %c0_i32_0 : i32, i32, i32
  }
}

</mosaic_0001>

<llo_original>
// kernel: _bottleneck_pallas.1
$region0: #{_bottleneck_pallas.1}
  #allocation0 [shape = 'u32[]', space=smem, size = 0x4, offset = 0x4, fixed_abs, tag = 'smem constant byte address 0x4 - core index']
  #allocation1 [shape = 'u32[144,128]{1,0:T(1,128)}', space=vmem, size = 0x12000, scoped, tag = 'internal scratch']
  #allocation2 [shape = 'bf16[2,64,256]{2,1,0:T(16,128)(2,1)}', space=vmem, size = 0x10000, scoped, tag = 'scratch operand']
  %s0 = inlined_call_operand.vmem [shape: bf16[2,16,256], index: 0, kind: input, shape index: {}]
  %s1 = inlined_call_operand.hbm [shape: bf16[16,16], index: 1, kind: input, shape index: {}]
  %s2 = inlined_call_operand.vmem [shape: f32[16,1], index: 2, kind: input, shape index: {}]
  %s3 = inlined_call_operand.hbm [shape: bf16[16,16], index: 3, kind: input, shape index: {}]
  %s4 = inlined_call_operand.vmem [shape: bf16[2,16,64], index: 4, kind: input, shape index: {}]
  %s5 = inlined_call_operand.vmem [shape: f32[16,1], index: 5, kind: input, shape index: {}]
  %s6 = inlined_call_operand.vmem [shape: bf16[16,16], index: 6, kind: input, shape index: {}]
  %s7 = inlined_call_operand.vmem [shape: f32[16,1], index: 7, kind: input, shape index: {}]
  %s8 = inlined_call_operand.vmem [shape: f32[8,1,256], index: 8, kind: input, shape index: {}]
  %s9 = inlined_call_operand.hbm [shape: f32[2,16,256], index: 9, kind: output, shape index: {}]
  %s10 = sld [smem:[#allocation0]]
  $region77: #{_bottleneck_pallas.1} parent=0
    _
  %s12 = ssub.s32 1, %s10
  %s13 = scalar_select 0, %s12, %s10
  $region1: #{_bottleneck_pallas.1} parent=0
    #allocation3 [shape = 'u8[4096]{0}', space=vmem, size = 0x1000, scoped, tag = 'input window, operand 1, single buffered']
    #allocation4 [shape = 's32[2]{0}', space=sflag, size = 0x8, scoped, tag = 'scoped memory for _bottleneck_pallas.1']
    #allocation5 [shape = 's32[2]{0}', space=sflag, size = 0x8, scoped, tag = 'scoped memory for _bottleneck_pallas.1']
    #allocation6 [shape = 'u8[4096]{0}', space=vmem, size = 0x1000, scoped, tag = 'input window, operand 3, single buffered']
    #allocation7 [shape = 's32[1]{0}', space=sflag, size = 0x4, scoped, tag = 'scoped memory for _bottleneck_pallas.1']
    #allocation8 [shape = 'u8[32768]{0}', space=vmem, size = 0x8000, scoped, tag = 'output window, operand 0']
    %14 = vsyncpa [#allocation4], 0
    %15 = vsyncpa [#allocation7], 0
    %16 = vsyncpa [#allocation5], 0
    %s17 = scalar_lea.sflag [#allocation5], 1
    %18 = vsyncpa %s17, 0
    loop: start=0, step=1, limit=4
    $region2: #{_bottleneck_pallas.1} parent=1 // loop_pre_header
      _
    $region3: #{_bottleneck_pallas.1} parent=1 // loop_header
      %s20 = sphi 0, %s24
      %p21 = scmp.ge.s32.totalorder %s20, 4
      %s30 = sphi 0, %s32
      %s33 = sphi 0, %s30
      %s34 = sphi 0, %s33
      %s50 = sphi 0, %s34
      %s54 = sphi 0, %s54
      %s56 = sphi 0, %s54
      %s57 = sphi 0, %s56
      %s71 = sphi 0, %s57
      %s75 = sphi 0, %s75
      %s77 = sphi 0, %s75
      %s78 = sphi 0, %s77
      %s92 = sphi 0, %s78
      %s96 = sphi 0, %s96
      %s98 = sphi 0, %s96
      %s99 = sphi 0, %s98
      %s113 = sphi 0, %s99
      %s117 = sphi 0, %s117
      %s119 = sphi 0, %s117
      %s120 = sphi 0, %s119
      %s134 = sphi 0, %s120
      %s138 = sphi 0, %s138
      %s140 = sphi 0, %s138
      %s141 = sphi 0, %s140
      %s155 = sphi 0, %s141
      %s159 = sphi 0, %s159
      %s161 = sphi 0, %s159
      %s162 = sphi 0, %s161
      %s176 = sphi 0, %s162
      %s180 = sphi 0, %s180
      %s182 = sphi 0, %s180
      %s183 = sphi 0, %s182
      %s197 = sphi 0, %s183
      %s201 = sphi 0, %s201
      %s203 = sphi 0, %s201
      %s204 = sphi 0, %s203
      %s218 = sphi 0, %s204
      %s224 = sphi 0, %s226
      %s227 = sphi 0, %s224
      %s228 = sphi 0, %s227
      %s244 = sphi 0, %s228
    $region4: #{_bottleneck_pallas.1} parent=1 // loop_header_branch
      %23 = sbr.rel (%p21) target = $region8
    $region5: #{_bottleneck_pallas.1} parent=1 // loop_body
      %s25 = ssub.s32 %s20, 1
      %s26 = ssub.s32 %s20, 2
      %s27 = sadd.s32 %s20, 1
      %s28 = ssub.s32 %s20, %s27
      %p29 = scmp.eq.s32.totalorder %s28, 0
      %s31 = sadd.s32 %s30, 1
      %s32 = scalar_select %p29, %s30, %s31
      %p35 = pneg %p29
      %p36 = scmp.eq.s32.totalorder %s20, 1
      %p37 = por %p35, %p36
      %p38 = scmp.ne.s32.totalorder %s30, %s33
      %p39 = scmp.eq.s32.totalorder %s20, 0
      %p40 = por %p38, %p39
      %p41 = scmp.ne.s32.totalorder %s30, %s33
      %p42 = scmp.eq.s32.totalorder %s25, 1
      %p43 = por %p41, %p42
      %p44 = scmp.ne.s32.totalorder %s33, %s34
      %p45 = scmp.eq.s32.totalorder %s25, 0
      %p46 = por %p44, %p45
      %p47 = scmp.ne.s32.totalorder %s33, %s34
      %p48 = scmp.eq.s32.totalorder %s26, 1
      %p49 = por %p47, %p48
      %p51 = scmp.ne.s32.totalorder %s34, %s50
      %p52 = scmp.eq.s32.totalorder %s26, 0
      %p53 = por %p51, %p52
      %s55 = sadd.s32 %s54, 1
      %p58 = scmp.eq.s32.totalorder %s20, 1
      %p59 = scmp.ne.s32.totalorder %s54, %s56
      %p60 = scmp.eq.s32.totalorder %s20, 0
      %p61 = por %p59, %p60
      %p62 = scmp.ne.s32.totalorder %s54, %s56
      %p63 = scmp.eq.s32.totalorder %s25, 1
      %p64 = por %p62, %p63
      %p65 = scmp.ne.s32.totalorder %s56, %s57
      %p66 = scmp.eq.s32.totalorder %s25, 0
      %p67 = por %p65, %p66
      %p68 = scmp.ne.s32.totalorder %s56, %s57
      %p69 = scmp.eq.s32.totalorder %s26, 1
      %p70 = por %p68, %p69
      %p72 = scmp.ne.s32.totalorder %s57, %s71
      %p73 = scmp.eq.s32.totalorder %s26, 0
      %p74 = por %p72, %p73
      %s76 = sadd.s32 %s75, 1
      %p79 = scmp.eq.s32.totalorder %s20, 1
      %p80 = scmp.ne.s32.totalorder %s75, %s77
      %p81 = scmp.eq.s32.totalorder %s20, 0
      %p82 = por %p80, %p81
      %p83 = scmp.ne.s32.totalorder %s75, %s77
      %p84 = scmp.eq.s32.totalorder %s25, 1
      %p85 = por %p83, %p84
      %p86 = scmp.ne.s32.totalorder %s77, %s78
      %p87 = scmp.eq.s32.totalorder %s25, 0
      %p88 = por %p86, %p87
      %p89 = scmp.ne.s32.totalorder %s77, %s78
      %p90 = scmp.eq.s32.totalorder %s26, 1
      %p91 = por %p89, %p90
      %p93 = scmp.ne.s32.totalorder %s78, %s92
      %p94 = scmp.eq.s32.totalorder %s26, 0
      %p95 = por %p93, %p94
      %s97 = sadd.s32 %s96, 1
      %p100 = scmp.eq.s32.totalorder %s20, 1
      %p101 = scmp.ne.s32.totalorder %s96, %s98
      %p102 = scmp.eq.s32.totalorder %s20, 0
      %p103 = por %p101, %p102
      %p104 = scmp.ne.s32.totalorder %s96, %s98
      %p105 = scmp.eq.s32.totalorder %s25, 1
      %p106 = por %p104, %p105
      %p107 = scmp.ne.s32.totalorder %s98, %s99
      %p108 = scmp.eq.s32.totalorder %s25, 0
      %p109 = por %p107, %p108
      %p110 = scmp.ne.s32.totalorder %s98, %s99
      %p111 = scmp.eq.s32.totalorder %s26, 1
      %p112 = por %p110, %p111
      %p114 = scmp.ne.s32.totalorder %s99, %s113
      %p115 = scmp.eq.s32.totalorder %s26, 0
      %p116 = por %p114, %p115
      %s118 = sadd.s32 %s117, 1
      %p121 = scmp.eq.s32.totalorder %s20, 1
      %p122 = scmp.ne.s32.totalorder %s117, %s119
      %p123 = scmp.eq.s32.totalorder %s20, 0
      %p124 = por %p122, %p123
      %p125 = scmp.ne.s32.totalorder %s117, %s119
      %p126 = scmp.eq.s32.totalorder %s25, 1
      %p127 = por %p125, %p126
      %p128 = scmp.ne.s32.totalorder %s119, %s120
      %p129 = scmp.eq.s32.totalorder %s25, 0
      %p130 = por %p128, %p129
      %p131 = scmp.ne.s32.totalorder %s119, %s120
      %p132 = scmp.eq.s32.totalorder %s26, 1
      %p133 = por %p131, %p132
      %p135 = scmp.ne.s32.totalorder %s120, %s134
      %p136 = scmp.eq.s32.totalorder %s26, 0
      %p137 = por %p135, %p136
      %s139 = sadd.s32 %s138, 1
      %p142 = scmp.eq.s32.totalorder %s20, 1
      %p143 = scmp.ne.s32.totalorder %s138, %s140
      %p144 = scmp.eq.s32.totalorder %s20, 0
      %p145 = por %p143, %p144
      %p146 = scmp.ne.s32.totalorder %s138, %s140
      %p147 = scmp.eq.s32.totalorder %s25, 1
      %p148 = por %p146, %p147
      %p149 = scmp.ne.s32.totalorder %s140, %s141
      %p150 = scmp.eq.s32.totalorder %s25, 0
      %p151 = por %p149, %p150
      %p152 = scmp.ne.s32.totalorder %s140, %s141
      %p153 = scmp.eq.s32.totalorder %s26, 1
      %p154 = por %p152, %p153
      %p156 = scmp.ne.s32.totalorder %s141, %s155
      %p157 = scmp.eq.s32.totalorder %s26, 0
      %p158 = por %p156, %p157
      %s160 = sadd.s32 %s159, 1
      %p163 = scmp.eq.s32.totalorder %s20, 1
      %p164 = scmp.ne.s32.totalorder %s159, %s161
      %p165 = scmp.eq.s32.totalorder %s20, 0
      %p166 = por %p164, %p165
      %p167 = scmp.ne.s32.totalorder %s159, %s161
      %p168 = scmp.eq.s32.totalorder %s25, 1
      %p169 = por %p167, %p168
      %p170 = scmp.ne.s32.totalorder %s161, %s162
      %p171 = scmp.eq.s32.totalorder %s25, 0
      %p172 = por %p170, %p171
      %p173 = scmp.ne.s32.totalorder %s161, %s162
      %p174 = scmp.eq.s32.totalorder %s26, 1
      %p175 = por %p173, %p174
      %p177 = scmp.ne.s32.totalorder %s162, %s176
      %p178 = scmp.eq.s32.totalorder %s26, 0
      %p179 = por %p177, %p178
      %s181 = sadd.s32 %s180, 1
      %p184 = scmp.eq.s32.totalorder %s20, 1
      %p185 = scmp.ne.s32.totalorder %s180, %s182
      %p186 = scmp.eq.s32.totalorder %s20, 0
      %p187 = por %p185, %p186
      %p188 = scmp.ne.s32.totalorder %s180, %s182
      %p189 = scmp.eq.s32.totalorder %s25, 1
      %p190 = por %p188, %p189
      %p191 = scmp.ne.s32.totalorder %s182, %s183
      %p192 = scmp.eq.s32.totalorder %s25, 0
      %p193 = por %p191, %p192
      %p194 = scmp.ne.s32.totalorder %s182, %s183
      %p195 = scmp.eq.s32.totalorder %s26, 1
      %p196 = por %p194, %p195
      %p198 = scmp.ne.s32.totalorder %s183, %s197
      %p199 = scmp.eq.s32.totalorder %s26, 0
      %p200 = por %p198, %p199
      %s202 = sadd.s32 %s201, 1
      %p205 = scmp.eq.s32.totalorder %s20, 1
      %p206 = scmp.ne.s32.totalorder %s201, %s203
      %p207 = scmp.eq.s32.totalorder %s20, 0
      %p208 = por %p206, %p207
      %p209 = scmp.ne.s32.totalorder %s201, %s203
      %p210 = scmp.eq.s32.totalorder %s25, 1
      %p211 = por %p209, %p210
      %p212 = scmp.ne.s32.totalorder %s203, %s204
      %p213 = scmp.eq.s32.totalorder %s25, 0
      %p214 = por %p212, %p213
      %p215 = scmp.ne.s32.totalorder %s203, %s204
      %p216 = scmp.eq.s32.totalorder %s26, 1
      %p217 = por %p215, %p216
      %p219 = scmp.ne.s32.totalorder %s204, %s218
      %p220 = scmp.eq.s32.totalorder %s26, 0
      %p221 = por %p219, %p220
      %s222 = ssub.s32 %s20, %s27
      %p223 = scmp.eq.s32.totalorder %s222, 0
      %s225 = sadd.s32 %s224, 1
      %s226 = scalar_select %p223, %s224, %s225
      %p229 = pneg %p223
      %p230 = scmp.eq.s32.totalorder %s20, 1
      %p231 = por %p229, %p230
      %p232 = scmp.ne.s32.totalorder %s224, %s227
      %p233 = scmp.eq.s32.totalorder %s20, 0
      %p234 = por %p232, %p233
      %p235 = scmp.ne.s32.totalorder %s224, %s227
      %p236 = scmp.eq.s32.totalorder %s25, 1
      %p237 = por %p235, %p236
      %p238 = scmp.ne.s32.totalorder %s227, %s228
      %p239 = scmp.eq.s32.totalorder %s25, 0
      %p240 = por %p238, %p239
      %p241 = scmp.ne.s32.totalorder %s227, %s228
      %p242 = scmp.eq.s32.totalorder %s26, 1
      %p243 = por %p241, %p242
      %p245 = scmp.ne.s32.totalorder %s228, %s244
      %p246 = scmp.eq.s32.totalorder %s26, 0
      %p247 = por %p245, %p246
      %p248 = scmp.le.s32.totalorder 1, %s20
      %p249 = scmp.lt.s32.totalorder %s20, 3
      %p250 = pnand %p248, %p249
      %p251 = pneg %p250
      // Predicated region
      $region9: #{_bottleneck_pallas.1} parent=5 // pred_check
        _
      $region10: #{_bottleneck_pallas.1} parent=5 // pred_check_branch
        %253 = sbr.rel (%p250) target = $region12
      $region11: #{_bottleneck_pallas.1} parent=5 // pred_region
        %s254 = ssub.s32 %s20, 1
        // Predicated region
        $region13: #{_bottleneck_pallas.1} parent=11 // pred_check
          %p255 = pneg %p67
        $region14: #{_bottleneck_pallas.1} parent=11 // pred_check_branch
          %257 = sbr.rel (%p255) target = $region16
        $region15: #{_bottleneck_pallas.1} parent=11 // pred_region
          %s259 = ssub.s32 128, 128
          %260 = vsyncadd [#allocation4], %s259
          %s261 = sshll.u32 [#allocation3], 4
          %s262 = int_to_ptr.vmem [resolvable:$true] %s261
          %267 = dma.hbm_to_vmem [thread:$0]  %s1, 128, %s262, [#allocation4], 64, 64, 4
        $region16: #{_bottleneck_pallas.1} parent=11 // pred_fallthru
          _
        // Predicated region
        $region17: #{_bottleneck_pallas.1} parent=11 // pred_check
          %p268 = pneg %p88
        $region18: #{_bottleneck_pallas.1} parent=11 // pred_check_branch
          %270 = sbr.rel (%p268) target = $region20
        $region19: #{_bottleneck_pallas.1} parent=11 // pred_region
          _
        $region20: #{_bottleneck_pallas.1} parent=11 // pred_fallthru
          _
        // Predicated region
        $region21: #{_bottleneck_pallas.1} parent=11 // pred_check
          %p271 = pneg %p109
        $region22: #{_bottleneck_pallas.1} parent=11 // pred_check_branch
          %273 = sbr.rel (%p271) target = $region24
        $region23: #{_bottleneck_pallas.1} parent=11 // pred_region
          %s275 = ssub.s32 128, 128
          %276 = vsyncadd [#allocation7], %s275
          %s277 = sshll.u32 [#allocation6], 4
          %s278 = int_to_ptr.vmem [resolvable:$true] %s277
          %283 = dma.hbm_to_vmem [thread:$0]  %s3, 128, %s278, [#allocation7], 64, 64, 4
        $region24: #{_bottleneck_pallas.1} parent=11 // pred_fallthru
          _
        // Predicated region
        $region25: #{_bottleneck_pallas.1} parent=11 // pred_check
          %p284 = pneg %p130
        $region26: #{_bottleneck_pallas.1} parent=11 // pred_check_branch
          %286 = sbr.rel (%p284) target = $region28
        $region27: #{_bottleneck_pallas.1} parent=11 // pred_region
          _
        $region28: #{_bottleneck_pallas.1} parent=11 // pred_fallthru
          _
        // Predicated region
        $region29: #{_bottleneck_pallas.1} parent=11 // pred_check
          %p287 = pneg %p151
        $region30: #{_bottleneck_pallas.1} parent=11 // pred_check_branch
          %289 = sbr.rel (%p287) target = $region32
        $region31: #{_bottleneck_pallas.1} parent=11 // pred_region
          _
        $region32: #{_bottleneck_pallas.1} parent=11 // pred_fallthru
          _
        // Predicated region
        $region33: #{_bottleneck_pallas.1} parent=11 // pred_check
          %p290 = pneg %p172
        $region34: #{_bottleneck_pallas.1} parent=11 // pred_check_branch
          %292 = sbr.rel (%p290) target = $region36
        $region35: #{_bottleneck_pallas.1} parent=11 // pred_region
          _
        $region36: #{_bottleneck_pallas.1} parent=11 // pred_fallthru
          _
        // Predicated region
        $region37: #{_bottleneck_pallas.1} parent=11 // pred_check
          %p293 = pneg %p193
        $region38: #{_bottleneck_pallas.1} parent=11 // pred_check_branch
          %295 = sbr.rel (%p293) target = $region40
        $region39: #{_bottleneck_pallas.1} parent=11 // pred_region
          _
        $region40: #{_bottleneck_pallas.1} parent=11 // pred_fallthru
          _
        // Predicated region
        $region41: #{_bottleneck_pallas.1} parent=11 // pred_check
          %p296 = pneg %p214
        $region42: #{_bottleneck_pallas.1} parent=11 // pred_check_branch
          %298 = sbr.rel (%p296) target = $region44
        $region43: #{_bottleneck_pallas.1} parent=11 // pred_region
          _
        $region44: #{_bottleneck_pallas.1} parent=11 // pred_fallthru
          _
      $region12: #{_bottleneck_pallas.1} parent=5 // pred_fallthru
        _
      %p299 = scmp.lt.s32.totalorder %s20, 2
      // Predicated region
      $region45: #{_bottleneck_pallas.1} parent=5 // pred_check
        %p300 = pneg %p299
      $region46: #{_bottleneck_pallas.1} parent=5 // pred_check_branch
        %302 = sbr.rel (%p300) target = $region48
      $region47: #{_bottleneck_pallas.1} parent=5 // pred_region
        // Predicated region
        $region49: #{_bottleneck_pallas.1} parent=47 // pred_check
          %p303 = pneg %p40
        $region50: #{_bottleneck_pallas.1} parent=47 // pred_check_branch
          %305 = sbr.rel (%p303) target = $region52
        $region51: #{_bottleneck_pallas.1} parent=47 // pred_region
          %p306 = scmp.lt.s32.totalorder %s20, 1
          %s307 = scalar_select %p306, %s20, 1
          %s308 = smul.addr %s307, 4
          %s309 = smul.addr %s308, 4
          %s310 = scalar_lea.vmem %s0, %s309
        $region52: #{_bottleneck_pallas.1} parent=47 // pred_fallthru
          _
      $region48: #{_bottleneck_pallas.1} parent=5 // pred_fallthru
        _
      %p311 = scmp.le.s32.totalorder 1, %s20
      %p312 = scmp.lt.s32.totalorder %s20, 3
      %p313 = pnand %p311, %p312
      %p314 = pneg %p313
      // Predicated region
      $region53: #{_bottleneck_pallas.1} parent=5 // pred_check
        _
      $region54: #{_bottleneck_pallas.1} parent=5 // pred_check_branch
        %316 = sbr.rel (%p313) target = $region56
      $region55: #{_bottleneck_pallas.1} parent=5 // pred_region
        %s317 = ssub.s32 %s20, 1
        // Predicated region
        $region57: #{_bottleneck_pallas.1} parent=55 // pred_check
          %p318 = pneg %p67
        $region58: #{_bottleneck_pallas.1} parent=55 // pred_check_branch
          %320 = sbr.rel (%p318) target = $region60
        $region59: #{_bottleneck_pallas.1} parent=55 // pred_region
          %321 = dma.done [#allocation4], 128
        $region60: #{_bottleneck_pallas.1} parent=55 // pred_fallthru
          _
        // Predicated region
        $region61: #{_bottleneck_pallas.1} parent=55 // pred_check
          %p322 = pneg %p109
        $region62: #{_bottleneck_pallas.1} parent=55 // pred_check_branch
          %324 = sbr.rel (%p322) target = $region64
        $region63: #{_bottleneck_pallas.1} parent=55 // pred_region
          %325 = dma.done [#allocation7], 128
        $region64: #{_bottleneck_pallas.1} parent=55 // pred_fallthru
          _
        %p326 = scmp.lt.s32.totalorder %s25, 1
        %s327 = scalar_select %p326, %s25, 1
        %s328 = smul.addr %s327, 4
        %s329 = smul.addr %s328, 4
        %s330 = scalar_lea.vmem %s0, %s329
        %p331 = pneg %p46
        %p332 = pneg %p43
        %p333 = pneg %p67
        %p334 = pneg %p64
        %p335 = pneg %p88
        %p336 = pneg %p85
        %p337 = pneg %p109
        %p338 = pneg %p106
        %p339 = pneg %p130
        %p340 = pneg %p127
        %p341 = pneg %p151
        %p342 = pneg %p148
        %p343 = pneg %p172
        %p344 = pneg %p169
        %p345 = pneg %p193
        %p346 = pneg %p190
        %p347 = pneg %p214
        %p348 = pneg %p211
        %p349 = pneg %p240
        %p350 = pneg %p237
        %s351 = sand.u32 %s227, 1
        %s352 = scalar_lea.sflag [#allocation5], %s351
        %s353 = sand.u32 %s227, 1
        %s354 = smul.addr %s353, 32
        %s355 = scalar_lea.vmem [#allocation8], %s354
        %p356 = scmp.lt.s32.totalorder %s25, 1
        %s357 = scalar_select %p356, %s25, 1
        %s358 = smul.addr %s357, 4
        %s359 = smul.addr %s358, 4
        %s360 = scalar_lea.vmem %s0, %s359
        %v362 = vld [vmem:[%s360] sm:$0xff]
        %v363 = vld [vmem:[%s360 + $0x8] sm:$0xff]
        %v364 = vld [vmem:[#allocation3] sm:$0xf]
        %v365 = vld [vmem:[#allocation3 + $0x4] sm:$0xf]
        %v366 = vld [vmem:[%s2] sm:$0xff]
        %v367 = vld [vmem:[%s2 + $0x8] sm:$0xff]
        %369 = vset.pattern.permute.xlu0 0
        %370 = vperm.xlu0 %369, %v366
        %v371 = vpop.permute.xlu0 %370
        %374 = vset.pattern.permute.xlu0 0
        %375 = vperm.xlu0 %374, %v367
        %v376 = vpop.permute.xlu0 %375
        %v380 = vunpack.c.l.b16 %v364
        %v381 = vunpack.c.l.b16 %v365
        %v382 = vpack.c.b16 %v381, %v380
        %v385 = vunpack.c.l.b16 %v362
        %v386 = vunpack.c.h.b16 %v362
        %v387 = vunpack.c.l.b16 %v363
        %v388 = vunpack.c.h.b16 %v363
        %v389 = vpack.c.b16 %v387, %v385
        %v390 = vpack.c.b16 %v388, %v386
        %vm393 = vcmask 130048
        %v395 = vsel %vm393, %v382, 0
        %397 = vmatprep.subr.bf16.mxu0 %v390
        %398 = vmatpush1.bf16.msra.mxu0 %v389
        %399 = vmatprep.subr.bf16.mxu0 0
        %400 = vmatpush1.bf16.msra.mxu0 0
        %401 = vmatprep.subr.bf16.mxu0 0
        %402 = vmatpush1.bf16.msra.mxu0 0
        %403 = vmatprep.subr.bf16.mxu0 0
        %404 = vmatpush1.bf16.msra.mxu0 0
        %405 = vmatprep.subr.bf16.mxu0 0
        %406 = vmatpush1.bf16.msra.mxu0 0
        %407 = vmatprep.subr.bf16.mxu0 0
        %408 = vmatpush1.bf16.msra.mxu0 0
        %409 = vmatprep.subr.bf16.mxu0 0
        %410 = vmatpush1.bf16.msra.mxu0 0
        %411 = vmatprep.subr.bf16.mxu0 0
        %412 = vmatpush1.bf16.msra.mxu0 0
        %413 = vmatprep.subr.bf16.mxu0 0
        %414 = vmatpush1.bf16.msra.mxu0 0
        %415 = vmatprep.subr.bf16.mxu0 0
        %416 = vmatpush1.bf16.msra.mxu0 0
        %417 = vmatprep.subr.bf16.mxu0 0
        %418 = vmatpush1.bf16.msra.mxu0 0
        %419 = vmatprep.subr.bf16.mxu0 0
        %420 = vmatpush1.bf16.msra.mxu0 0
        %421 = vmatprep.subr.bf16.mxu0 0
        %422 = vmatpush1.bf16.msra.mxu0 0
        %423 = vmatprep.subr.bf16.mxu0 0
        %424 = vmatpush1.bf16.msra.mxu0 0
        %425 = vmatprep.subr.bf16.mxu0 0
        %426 = vmatpush1.bf16.msra.mxu0 0
        %427 = vmatprep.subr.bf16.mxu0 0
        %428 = vmatpush1.bf16.msra.mxu0 0
        %429 = vmatprep.mubr.bf16.mxu0 0
        %430 = vmatmul.mubr.bf16.gmra.mrb[0].mxu0 %v395
        %v431 = vpop.f32.mrb[0].mxu0
        %v432 = vadd.f32 %v371, %v431
        %v433 = vpop.f32.mrb[0].mxu0
        %v434 = vadd.f32 %v371, %v433
        %v435 = vpop.f32.mrb[0].mxu0
        %v436 = vadd.f32 %v376, %v435
        %v437 = vpop.f32.mrb[0].mxu0
        %v438 = vadd.f32 %v376, %v437
        %439 = vdwg.mxu0
        %v440 = vmax.f32 %v432, 0.0
        %v441 = vmax.f32 %v434, 0.0
        %v442 = vmax.f32 %v436, 0.0
        %v443 = vmax.f32 %v438, 0.0
        %v444 = vpack.c.bf16 %v442, %v440
        %v445 = vpack.c.bf16 %v443, %v441
        %v446 = vld [vmem:[#allocation6] sm:$0xf]
        %v447 = vld [vmem:[#allocation6 + $0x4] sm:$0xf]
        %450 = vrot.lane.b32.xlu0 %v441, 17
        %v451 = vpop.permute.xlu0 %450
        %452 = vrot.lane.b32.xlu0 %v443, 17
        %v453 = vpop.permute.xlu0 %452
        %458 = vrot.lane.b32.xlu0 %v440, 17
        %v459 = vpop.permute.xlu0 %458
        %460 = vrot.lane.b32.xlu0 %v442, 17
        %v461 = vpop.permute.xlu0 %460
        %vm462 = vcmask 138240
        %v463 = vsel %vm462, %v459, %v451
        %v464 = vsel %vm462, %v461, %v453
        %v469 = vsel %vm462, %v451, %v459
        %v470 = vsel %vm462, %v453, %v461
        %v471 = vld [vmem:[%s8] sm:$0x3]
        %v473 = vlaneseq
        %v474 = vshrl.u32 %v473, 7
        %v475 = vsub.s32 0, %v474
        %v476 = vrot.slane %v471, %v475
        %v477 = vlaneseq
        %v478 = vshrl.u32 %v477, 7
        %v479 = vsub.s32 1, %v478
        %v480 = vrot.slane %v471, %v479
        %v483 = vmul.f32 %v469, %v476
        %v484 = vmul.f32 %v463, %v480
        %v485 = vmul.f32 %v470, %v476
        %v486 = vmul.f32 %v464, %v480
        %v487 = vpack.c.bf16 %v485, %v483
        %v488 = vpack.c.bf16 %v486, %v484
        %489 = vst [vmem:[#allocation2] sm:$0xff] %v487
        %490 = vst [vmem:[#allocation2 + $0x8] sm:$0xff] %v488
        %491 = vrot.lane.b32.xlu0 %v441, 16
        %v492 = vpop.permute.xlu0 %491
        %493 = vrot.lane.b32.xlu0 %v443, 16
        %v494 = vpop.permute.xlu0 %493
        %497 = vrot.lane.b32.xlu0 %v440, 16
        %v498 = vpop.permute.xlu0 %497
        %499 = vrot.lane.b32.xlu0 %v442, 16
        %v500 = vpop.permute.xlu0 %499
        %v501 = vsel %vm393, %v498, %v492
        %v502 = vsel %vm393, %v500, %v494
        %v507 = vsel %vm393, %v492, %v498
        %v508 = vsel %vm393, %v494, %v500
        %s509 = scalar_lea.vmem %s8, 2
        %v510 = vld [vmem:[%s509] sm:$0x3]
        %v512 = vlaneseq
        %v513 = vshrl.u32 %v512, 7
        %v514 = vsub.s32 0, %v513
        %v515 = vrot.slane %v510, %v514
        %v516 = vlaneseq
        %v517 = vshrl.u32 %v516, 7
        %v518 = vsub.s32 1, %v517
        %v519 = vrot.slane %v510, %v518
        %v522 = vmul.f32 %v507, %v515
        %v523 = vmul.f32 %v501, %v519
        %v524 = vmul.f32 %v508, %v515
        %v525 = vmul.f32 %v502, %v519
        %v526 = vpack.c.bf16 %v524, %v522
        %v527 = vpack.c.bf16 %v525, %v523
        %528 = vst [vmem:[#allocation2 + $0x10] sm:$0xff] %v526
        %529 = vst [vmem:[#allocation2 + $0x18] sm:$0xff] %v527
        %530 = vrot.lane.b32.xlu0 %v441, 15
        %v531 = vpop.permute.xlu0 %530
        %532 = vrot.lane.b32.xlu0 %v443, 15
        %v533 = vpop.permute.xlu0 %532
        %536 = vrot.lane.b32.xlu0 %v440, 15
        %v537 = vpop.permute.xlu0 %536
        %538 = vrot.lane.b32.xlu0 %v442, 15
        %v539 = vpop.permute.xlu0 %538
        %vm540 = vcmask 121856
        %v541 = vsel %vm540, %v537, %v531
        %v542 = vsel %vm540, %v539, %v533
        %v547 = vsel %vm540, %v531, %v537
        %v548 = vsel %vm540, %v533, %v539
        %s549 = scalar_lea.vmem %s8, 4
        %v550 = vld [vmem:[%s549] sm:$0x3]
        %v552 = vlaneseq
        %v553 = vshrl.u32 %v552, 7
        %v554 = vsub.s32 0, %v553
        %v555 = vrot.slane %v550, %v554
        %v556 = vlaneseq
        %v557 = vshrl.u32 %v556, 7
        %v558 = vsub.s32 1, %v557
        %v559 = vrot.slane %v550, %v558
        %v562 = vmul.f32 %v547, %v555
        %v563 = vmul.f32 %v541, %v559
        %v564 = vmul.f32 %v548, %v555
        %v565 = vmul.f32 %v542, %v559
        %v566 = vpack.c.bf16 %v564, %v562
        %v567 = vpack.c.bf16 %v565, %v563
        %568 = vst [vmem:[#allocation2 + $0x20] sm:$0xff] %v566
        %569 = vst [vmem:[#allocation2 + $0x28] sm:$0xff] %v567
        %570 = vrot.lane.b32.xlu0 %v441, 1
        %v571 = vpop.permute.xlu0 %570
        %572 = vrot.lane.b32.xlu0 %v443, 1
        %v573 = vpop.permute.xlu0 %572
        %576 = vrot.lane.b32.xlu0 %v440, 1
        %v577 = vpop.permute.xlu0 %576
        %578 = vrot.lane.b32.xlu0 %v442, 1
        %v579 = vpop.permute.xlu0 %578
        %vm580 = vcmask 7168
        %v581 = vsel %vm580, %v577, %v571
        %v582 = vsel %vm580, %v579, %v573
        %v587 = vsel %vm580, %v571, %v577
        %v588 = vsel %vm580, %v573, %v579
        %s589 = scalar_lea.vmem %s8, 6
        %v590 = vld [vmem:[%s589] sm:$0x3]
        %v592 = vlaneseq
        %v593 = vshrl.u32 %v592, 7
        %v594 = vsub.s32 0, %v593
        %v595 = vrot.slane %v590, %v594
        %v596 = vlaneseq
        %v597 = vshrl.u32 %v596, 7
        %v598 = vsub.s32 1, %v597
        %v599 = vrot.slane %v590, %v598
        %v602 = vmul.f32 %v587, %v595
        %v603 = vmul.f32 %v581, %v599
        %v604 = vmul.f32 %v588, %v595
        %v605 = vmul.f32 %v582, %v599
        %v606 = vpack.c.bf16 %v604, %v602
        %v607 = vpack.c.bf16 %v605, %v603
        %608 = vst [vmem:[#allocation2 + $0x30] sm:$0xff] %v606
        %609 = vst [vmem:[#allocation2 + $0x38] sm:$0xff] %v607
        %v610 = vld [vmem:[%s4] sm:$0xf]
        %v611 = vld [vmem:[%s4 + $0x4] sm:$0xf]
        %v612 = vld [vmem:[#allocation2] sm:$0xff]
        %v613 = vld [vmem:[#allocation2 + $0x8] sm:$0xff]
        %v614 = vld [vmem:[#allocation2 + $0x10] sm:$0xff]
        %v615 = vld [vmem:[#allocation2 + $0x18] sm:$0xff]
        %v616 = vld [vmem:[#allocation2 + $0x20] sm:$0xff]
        %v617 = vld [vmem:[#allocation2 + $0x28] sm:$0xff]
        %v618 = vld [vmem:[#allocation2 + $0x30] sm:$0xff]
        %v619 = vld [vmem:[#allocation2 + $0x38] sm:$0xff]
        %v622 = vunpack.c.l.b16 %v610
        %v623 = vunpack.c.l.b16 %v611
        %v624 = vpack.c.b16 %v623, %v622
        %vm625 = vcmask 523264
        %v627 = vsel %vm625, %v624, 0
        %629 = vmatprep.subr.bf16.mxu0 %v613
        %630 = vmatpush1.bf16.msra.mxu0 %v612
        %631 = vmatprep.subr.bf16.mxu0 %v615
        %632 = vmatpush1.bf16.msra.mxu0 %v614
        %633 = vmatprep.subr.bf16.mxu0 %v617
        %634 = vmatpush1.bf16.msra.mxu0 %v616
        %635 = vmatprep.subr.bf16.mxu0 %v619
        %636 = vmatpush1.bf16.msra.mxu0 %v618
        %637 = vmatprep.subr.bf16.mxu0 0
        %638 = vmatpush1.bf16.msra.mxu0 0
        %639 = vmatprep.subr.bf16.mxu0 0
        %640 = vmatpush1.bf16.msra.mxu0 0
        %641 = vmatprep.subr.bf16.mxu0 0
        %642 = vmatpush1.bf16.msra.mxu0 0
        %643 = vmatprep.subr.bf16.mxu0 0
        %644 = vmatpush1.bf16.msra.mxu0 0
        %645 = vmatprep.subr.bf16.mxu0 0
        %646 = vmatpush1.bf16.msra.mxu0 0
        %647 = vmatprep.subr.bf16.mxu0 0
        %648 = vmatpush1.bf16.msra.mxu0 0
        %649 = vmatprep.subr.bf16.mxu0 0
        %650 = vmatpush1.bf16.msra.mxu0 0
        %651 = vmatprep.subr.bf16.mxu0 0
        %652 = vmatpush1.bf16.msra.mxu0 0
        %653 = vmatprep.subr.bf16.mxu0 0
        %654 = vmatpush1.bf16.msra.mxu0 0
        %655 = vmatprep.subr.bf16.mxu0 0
        %656 = vmatpush1.bf16.msra.mxu0 0
        %657 = vmatprep.subr.bf16.mxu0 0
        %658 = vmatpush1.bf16.msra.mxu0 0
        %659 = vmatprep.subr.bf16.mxu0 0
        %660 = vmatpush1.bf16.msra.mxu0 0
        %661 = vmatprep.mubr.bf16.mxu0 0
        %662 = vmatmul.mubr.bf16.gmra.mrb[0].mxu0 %v627
        %v663 = vpop.f32.mrb[0].mxu0
        %v664 = vadd.f32 0.0, %v663
        %v665 = vpop.f32.mrb[0].mxu0
        %v666 = vadd.f32 0.0, %v665
        %v667 = vpop.f32.mrb[0].mxu0
        %v668 = vadd.f32 0.0, %v667
        %v669 = vpop.f32.mrb[0].mxu0
        %v670 = vadd.f32 0.0, %v669
        %671 = vdwg.mxu0
        %v674 = vunpack.c.l.b16 %v446
        %v675 = vunpack.c.l.b16 %v447
        %v676 = vpack.c.b16 %v675, %v674
        %v678 = vsel %vm393, %v676, 0
        %680 = vmatprep.subr.bf16.mxu0 %v445
        %681 = vmatpush1.bf16.msra.mxu0 %v444
        %682 = vmatprep.subr.bf16.mxu0 0
        %683 = vmatpush1.bf16.msra.mxu0 0
        %684 = vmatprep.subr.bf16.mxu0 0
        %685 = vmatpush1.bf16.msra.mxu0 0
        %686 = vmatprep.subr.bf16.mxu0 0
        %687 = vmatpush1.bf16.msra.mxu0 0
        %688 = vmatprep.subr.bf16.mxu0 0
        %689 = vmatpush1.bf16.msra.mxu0 0
        %690 = vmatprep.subr.bf16.mxu0 0
        %691 = vmatpush1.bf16.msra.mxu0 0
        %692 = vmatprep.subr.bf16.mxu0 0
        %693 = vmatpush1.bf16.msra.mxu0 0
        %694 = vmatprep.subr.bf16.mxu0 0
        %695 = vmatpush1.bf16.msra.mxu0 0
        %696 = vmatprep.subr.bf16.mxu0 0
        %697 = vmatpush1.bf16.msra.mxu0 0
        %698 = vmatprep.subr.bf16.mxu0 0
        %699 = vmatpush1.bf16.msra.mxu0 0
        %700 = vmatprep.subr.bf16.mxu0 0
        %701 = vmatpush1.bf16.msra.mxu0 0
        %702 = vmatprep.subr.bf16.mxu0 0
        %703 = vmatpush1.bf16.msra.mxu0 0
        %704 = vmatprep.subr.bf16.mxu0 0
        %705 = vmatpush1.bf16.msra.mxu0 0
        %706 = vmatprep.subr.bf16.mxu0 0
        %707 = vmatpush1.bf16.msra.mxu0 0
        %708 = vmatprep.subr.bf16.mxu0 0
        %709 = vmatpush1.bf16.msra.mxu0 0
        %710 = vmatprep.subr.bf16.mxu0 0
        %711 = vmatpush1.bf16.msra.mxu0 0
        %712 = vmatprep.mubr.bf16.mxu0 0
        %713 = vmatmul.mubr.bf16.gmra.mrb[0].mxu0 %v678
        %v714 = vpop.f32.mrb[0].mxu0
        %v715 = vadd.f32 %v664, %v714
        %v716 = vpop.f32.mrb[0].mxu0
        %v717 = vadd.f32 %v666, %v716
        %v718 = vpop.f32.mrb[0].mxu0
        %v719 = vadd.f32 %v668, %v718
        %v720 = vpop.f32.mrb[0].mxu0
        %v721 = vadd.f32 %v670, %v720
        %722 = vdwg.mxu0
        %723 = vrot.lane.b32.xlu0 %v440, 127
        %v724 = vpop.permute.xlu0 %723
        %725 = vrot.lane.b32.xlu0 %v441, 127
        %v726 = vpop.permute.xlu0 %725
        %727 = vrot.lane.b32.xlu0 %v442, 127
        %v728 = vpop.permute.xlu0 %727
        %729 = vrot.lane.b32.xlu0 %v443, 127
        %v730 = vpop.permute.xlu0 %729
        %vm731 = vcmask 1039360
        %v732 = vsel %vm731, %v724, %v726
        %v733 = vsel %vm731, %v728, %v730
        %v740 = vsel %vm731, %v726, %v724
        %v741 = vsel %vm731, %v730, %v728
        %s742 = scalar_lea.vmem %s8, 8
        %v743 = vld [vmem:[%s742] sm:$0x3]
        %v745 = vlaneseq
        %v746 = vshrl.u32 %v745, 7
        %v747 = vsub.s32 0, %v746
        %v748 = vrot.slane %v743, %v747
        %v749 = vlaneseq
        %v750 = vshrl.u32 %v749, 7
        %v751 = vsub.s32 1, %v750
        %v752 = vrot.slane %v743, %v751
        %v755 = vmul.f32 %v732, %v748
        %v756 = vmul.f32 %v740, %v752
        %v757 = vmul.f32 %v733, %v748
        %v758 = vmul.f32 %v741, %v752
        %v759 = vpack.c.bf16 %v757, %v755
        %v760 = vpack.c.bf16 %v758, %v756
        %s761 = scalar_lea.vmem [#allocation2], 64
        %762 = vst [vmem:[%s761] sm:$0xff] %v759
        %763 = vst [vmem:[%s761 + $0x8] sm:$0xff] %v760
        %764 = vrot.lane.b32.xlu0 %v440, 113
        %v765 = vpop.permute.xlu0 %764
        %766 = vrot.lane.b32.xlu0 %v441, 113
        %v767 = vpop.permute.xlu0 %766
        %768 = vrot.lane.b32.xlu0 %v442, 113
        %v769 = vpop.permute.xlu0 %768
        %770 = vrot.lane.b32.xlu0 %v443, 113
        %v771 = vpop.permute.xlu0 %770
        %vm772 = vcmask 924672
        %v773 = vsel %vm772, %v765, %v767
        %v774 = vsel %vm772, %v769, %v771
        %v781 = vsel %vm772, %v767, %v765
        %v782 = vsel %vm772, %v771, %v769
        %s783 = scalar_lea.vmem %s8, 10
        %v784 = vld [vmem:[%s783] sm:$0x3]
        %v786 = vlaneseq
        %v787 = vshrl.u32 %v786, 7
        %v788 = vsub.s32 0, %v787
        %v789 = vrot.slane %v784, %v788
        %v790 = vlaneseq
        %v791 = vshrl.u32 %v790, 7
        %v792 = vsub.s32 1, %v791
        %v793 = vrot.slane %v784, %v792
        %v796 = vmul.f32 %v773, %v789
        %v797 = vmul.f32 %v781, %v793
        %v798 = vmul.f32 %v774, %v789
        %v799 = vmul.f32 %v782, %v793
        %v800 = vpack.c.bf16 %v798, %v796
        %v801 = vpack.c.bf16 %v799, %v797
        %802 = vst [vmem:[%s761 + $0x10] sm:$0xff] %v800
        %803 = vst [vmem:[%s761 + $0x18] sm:$0xff] %v801
        %804 = vrot.lane.b32.xlu0 %v440, 112
        %v805 = vpop.permute.xlu0 %804
        %806 = vrot.lane.b32.xlu0 %v441, 112
        %v807 = vpop.permute.xlu0 %806
        %808 = vrot.lane.b32.xlu0 %v442, 112
        %v809 = vpop.permute.xlu0 %808
        %810 = vrot.lane.b32.xlu0 %v443, 112
        %v811 = vpop.permute.xlu0 %810
        %vm812 = vcmask 916480
        %v813 = vsel %vm812, %v805, %v807
        %v814 = vsel %vm812, %v809, %v811
        %v821 = vsel %vm812, %v807, %v805
        %v822 = vsel %vm812, %v811, %v809
        %s823 = scalar_lea.vmem %s8, 12
        %v824 = vld [vmem:[%s823] sm:$0x3]
        %v826 = vlaneseq
        %v827 = vshrl.u32 %v826, 7
        %v828 = vsub.s32 0, %v827
        %v829 = vrot.slane %v824, %v828
        %v830 = vlaneseq
        %v831 = vshrl.u32 %v830, 7
        %v832 = vsub.s32 1, %v831
        %v833 = vrot.slane %v824, %v832
        %v836 = vmul.f32 %v813, %v829
        %v837 = vmul.f32 %v821, %v833
        %v838 = vmul.f32 %v814, %v829
        %v839 = vmul.f32 %v822, %v833
        %v840 = vpack.c.bf16 %v838, %v836
        %v841 = vpack.c.bf16 %v839, %v837
        %842 = vst [vmem:[%s761 + $0x20] sm:$0xff] %v840
        %843 = vst [vmem:[%s761 + $0x28] sm:$0xff] %v841
        %844 = vrot.lane.b32.xlu0 %v440, 111
        %v845 = vpop.permute.xlu0 %844
        %846 = vrot.lane.b32.xlu0 %v441, 111
        %v847 = vpop.permute.xlu0 %846
        %848 = vrot.lane.b32.xlu0 %v442, 111
        %v849 = vpop.permute.xlu0 %848
        %850 = vrot.lane.b32.xlu0 %v443, 111
        %v851 = vpop.permute.xlu0 %850
        %vm852 = vcmask 908288
        %v853 = vsel %vm852, %v845, %v847
        %v854 = vsel %vm852, %v849, %v851
        %v861 = vsel %vm852, %v847, %v845
        %v862 = vsel %vm852, %v851, %v849
        %s863 = scalar_lea.vmem %s8, 14
        %v864 = vld [vmem:[%s863] sm:$0x3]
        %v866 = vlaneseq
        %v867 = vshrl.u32 %v866, 7
        %v868 = vsub.s32 0, %v867
        %v869 = vrot.slane %v864, %v868
        %v870 = vlaneseq
        %v871 = vshrl.u32 %v870, 7
        %v872 = vsub.s32 1, %v871
        %v873 = vrot.slane %v864, %v872
        %v876 = vmul.f32 %v853, %v869
        %v877 = vmul.f32 %v861, %v873
        %v878 = vmul.f32 %v854, %v869
        %v879 = vmul.f32 %v862, %v873
        %v880 = vpack.c.bf16 %v878, %v876
        %v881 = vpack.c.bf16 %v879, %v877
        %882 = vst [vmem:[%s761 + $0x30] sm:$0xff] %v880
        %883 = vst [vmem:[%s761 + $0x38] sm:$0xff] %v881
        %s884 = scalar_lea.vmem %s4, 8
        %v885 = vld [vmem:[%s884] sm:$0xf]
        %v886 = vld [vmem:[%s884 + $0x4] sm:$0xf]
        %v887 = vld [vmem:[%s761] sm:$0xff]
        %v888 = vld [vmem:[%s761 + $0x8] sm:$0xff]
        %v889 = vld [vmem:[%s761 + $0x10] sm:$0xff]
        %v890 = vld [vmem:[%s761 + $0x18] sm:$0xff]
        %v891 = vld [vmem:[%s761 + $0x20] sm:$0xff]
        %v892 = vld [vmem:[%s761 + $0x28] sm:$0xff]
        %v893 = vld [vmem:[%s761 + $0x30] sm:$0xff]
        %v894 = vld [vmem:[%s761 + $0x38] sm:$0xff]
        %v897 = vunpack.c.l.b16 %v885
        %v898 = vunpack.c.l.b16 %v886
        %v899 = vpack.c.b16 %v898, %v897
        %v901 = vsel %vm625, %v899, 0
        %903 = vmatprep.subr.bf16.mxu0 %v888
        %904 = vmatpush1.bf16.msra.mxu0 %v887
        %905 = vmatprep.subr.bf16.mxu0 %v890
        %906 = vmatpush1.bf16.msra.mxu0 %v889
        %907 = vmatprep.subr.bf16.mxu0 %v892
        %908 = vmatpush1.bf16.msra.mxu0 %v891
        %909 = vmatprep.subr.bf16.mxu0 %v894
        %910 = vmatpush1.bf16.msra.mxu0 %v893
        %911 = vmatprep.subr.bf16.mxu0 0
        %912 = vmatpush1.bf16.msra.mxu0 0
        %913 = vmatprep.subr.bf16.mxu0 0
        %914 = vmatpush1.bf16.msra.mxu0 0
        %915 = vmatprep.subr.bf16.mxu0 0
        %916 = vmatpush1.bf16.msra.mxu0 0
        %917 = vmatprep.subr.bf16.mxu0 0
        %918 = vmatpush1.bf16.msra.mxu0 0
        %919 = vmatprep.subr.bf16.mxu0 0
        %920 = vmatpush1.bf16.msra.mxu0 0
        %921 = vmatprep.subr.bf16.mxu0 0
        %922 = vmatpush1.bf16.msra.mxu0 0
        %923 = vmatprep.subr.bf16.mxu0 0
        %924 = vmatpush1.bf16.msra.mxu0 0
        %925 = vmatprep.subr.bf16.mxu0 0
        %926 = vmatpush1.bf16.msra.mxu0 0
        %927 = vmatprep.subr.bf16.mxu0 0
        %928 = vmatpush1.bf16.msra.mxu0 0
        %929 = vmatprep.subr.bf16.mxu0 0
        %930 = vmatpush1.bf16.msra.mxu0 0
        %931 = vmatprep.subr.bf16.mxu0 0
        %932 = vmatpush1.bf16.msra.mxu0 0
        %933 = vmatprep.subr.bf16.mxu0 0
        %934 = vmatpush1.bf16.msra.mxu0 0
        %935 = vmatprep.mubr.bf16.mxu0 0
        %936 = vmatmul.mubr.bf16.gmra.mrb[0].mxu0 %v901
        %v937 = vpop.f32.mrb[0].mxu0
        %v938 = vadd.f32 0.0, %v937
        %v939 = vpop.f32.mrb[0].mxu0
        %v940 = vadd.f32 0.0, %v939
        %v941 = vpop.f32.mrb[0].mxu0
        %v942 = vadd.f32 0.0, %v941
        %v943 = vpop.f32.mrb[0].mxu0
        %v944 = vadd.f32 0.0, %v943
        %945 = vdwg.mxu0
        %v946 = vadd.f32 %v715, %v938
        %v947 = vadd.f32 %v717, %v940
        %v948 = vadd.f32 %v719, %v942
        %v949 = vadd.f32 %v721, %v944
        %v950 = vld [vmem:[%s5] sm:$0xff]
        %v951 = vld [vmem:[%s5 + $0x8] sm:$0xff]
        %953 = vset.pattern.permute.xlu0 0
        %954 = vperm.xlu0 %953, %v950
        %v955 = vpop.permute.xlu0 %954
        %958 = vset.pattern.permute.xlu0 0
        %959 = vperm.xlu0 %958, %v951
        %v960 = vpop.permute.xlu0 %959
        %v962 = vadd.f32 %v946, %v955
        %v963 = vadd.f32 %v947, %v955
        %v964 = vadd.f32 %v948, %v960
        %v965 = vadd.f32 %v949, %v960
        %v966 = vmax.f32 %v962, 0.0
        %v967 = vmax.f32 %v963, 0.0
        %v968 = vmax.f32 %v964, 0.0
        %v969 = vmax.f32 %v965, 0.0
        %v970 = vld [vmem:[%s6] sm:$0xf]
        %v971 = vld [vmem:[%s6 + $0x4] sm:$0xf]
        %v972 = vpack.c.bf16 %v968, %v966
        %v973 = vpack.c.bf16 %v969, %v967
        %v974 = vld [vmem:[%s7] sm:$0xff]
        %v975 = vld [vmem:[%s7 + $0x8] sm:$0xff]
        %977 = vset.pattern.permute.xlu0 0
        %978 = vperm.xlu0 %977, %v974
        %v979 = vpop.permute.xlu0 %978
        %982 = vset.pattern.permute.xlu0 0
        %983 = vperm.xlu0 %982, %v975
        %v984 = vpop.permute.xlu0 %983
        %v988 = vunpack.c.l.b16 %v970
        %v989 = vunpack.c.l.b16 %v971
        %v990 = vpack.c.b16 %v989, %v988
        %v992 = vsel %vm393, %v990, 0
        %994 = vmatprep.subr.bf16.mxu0 %v973
        %995 = vmatpush1.bf16.msra.mxu0 %v972
        %996 = vmatprep.subr.bf16.mxu0 0
        %997 = vmatpush1.bf16.msra.mxu0 0
        %998 = vmatprep.subr.bf16.mxu0 0
        %999 = vmatpush1.bf16.msra.mxu0 0
        %1000 = vmatprep.subr.bf16.mxu0 0
        %1001 = vmatpush1.bf16.msra.mxu0 0
        %1002 = vmatprep.subr.bf16.mxu0 0
        %1003 = vmatpush1.bf16.msra.mxu0 0
        %1004 = vmatprep.subr.bf16.mxu0 0
        %1005 = vmatpush1.bf16.msra.mxu0 0
        %1006 = vmatprep.subr.bf16.mxu0 0
        %1007 = vmatpush1.bf16.msra.mxu0 0
        %1008 = vmatprep.subr.bf16.mxu0 0
        %1009 = vmatpush1.bf16.msra.mxu0 0
        %1010 = vmatprep.subr.bf16.mxu0 0
        %1011 = vmatpush1.bf16.msra.mxu0 0
        %1012 = vmatprep.subr.bf16.mxu0 0
        %1013 = vmatpush1.bf16.msra.mxu0 0
        %1014 = vmatprep.subr.bf16.mxu0 0
        %1015 = vmatpush1.bf16.msra.mxu0 0
        %1016 = vmatprep.subr.bf16.mxu0 0
        %1017 = vmatpush1.bf16.msra.mxu0 0
        %1018 = vmatprep.subr.bf16.mxu0 0
        %1019 = vmatpush1.bf16.msra.mxu0 0
        %1020 = vmatprep.subr.bf16.mxu0 0
        %1021 = vmatpush1.bf16.msra.mxu0 0
        %1022 = vmatprep.subr.bf16.mxu0 0
        %1023 = vmatpush1.bf16.msra.mxu0 0
        %1024 = vmatprep.subr.bf16.mxu0 0
        %1025 = vmatpush1.bf16.msra.mxu0 0
        %1026 = vmatprep.mubr.bf16.mxu0 0
        %1027 = vmatmul.mubr.bf16.gmra.mrb[0].mxu0 %v992
        %v1028 = vpop.f32.mrb[0].mxu0
        %v1029 = vadd.f32 %v979, %v1028
        %v1030 = vpop.f32.mrb[0].mxu0
        %v1031 = vadd.f32 %v979, %v1030
        %v1032 = vpop.f32.mrb[0].mxu0
        %v1033 = vadd.f32 %v984, %v1032
        %v1034 = vpop.f32.mrb[0].mxu0
        %v1035 = vadd.f32 %v984, %v1034
        %1036 = vdwg.mxu0
        %v1037 = vunpack.c.l.bf16 %v362
        %v1038 = vunpack.c.h.bf16 %v362
        %v1039 = vunpack.c.l.bf16 %v363
        %v1040 = vunpack.c.h.bf16 %v363
        %v1041 = vadd.f32 %v1029, %v1037
        %v1042 = vadd.f32 %v1031, %v1038
        %v1043 = vadd.f32 %v1033, %v1039
        %v1044 = vadd.f32 %v1035, %v1040
        %v1045 = vmax.f32 %v1041, 0.0
        %v1046 = vmax.f32 %v1042, 0.0
        %v1047 = vmax.f32 %v1043, 0.0
        %v1048 = vmax.f32 %v1044, 0.0
        %1049 = vst [vmem:[%s355] sm:$0xff] %v1045
        %1050 = vst [vmem:[%s355 + $0x8] sm:$0xff] %v1046
        %1051 = vst [vmem:[%s355 + $0x10] sm:$0xff] %v1047
        %1052 = vst [vmem:[%s355 + $0x18] sm:$0xff] %v1048
        %s1053 = sand.u32 %s227, 1
        %s1054 = scalar_lea.sflag [#allocation5], %s1053
        %s1055 = sand.u32 %s227, 1
        %s1056 = smul.addr %s1055, 32
        %s1057 = scalar_lea.vmem [#allocation8], %s1056
        // Predicated region
        $region65: #{_bottleneck_pallas.1} parent=55 // pred_check
          %p1058 = pneg %p237
        $region66: #{_bottleneck_pallas.1} parent=55 // pred_check_branch
          %1060 = sbr.rel (%p1058) target = $region68
        $region67: #{_bottleneck_pallas.1} parent=55 // pred_region
          %s1062 = ssub.s32 512, 512
          %1063 = vsyncadd %s1054, %s1062
          %s1064 = smul.addr %s25, 4
          %s1065 = smul.addr %s1064, 128
          %s1066 = scalar_lea.hbm %s9, %s1065
          %s1067 = sshll.u32 %s1057, 4
          %s1068 = int_to_ptr.vmem [resolvable:$true] %s1067
          %1073 = dma.vmem_to_hbm [thread:$0]  %s1068, 512, %s1066, %s1054, 256, 256, 16
        $region68: #{_bottleneck_pallas.1} parent=55 // pred_fallthru
          _
      $region56: #{_bottleneck_pallas.1} parent=5 // pred_fallthru
        _
      %p1074 = scmp.le.s32.totalorder 2, %s20
      // Predicated region
      $region69: #{_bottleneck_pallas.1} parent=5 // pred_check
        %p1075 = pneg %p1074
      $region70: #{_bottleneck_pallas.1} parent=5 // pred_check_branch
        %1077 = sbr.rel (%p1075) target = $region72
      $region71: #{_bottleneck_pallas.1} parent=5 // pred_region
        %s1078 = ssub.s32 %s20, 2
        // Predicated region
        $region73: #{_bottleneck_pallas.1} parent=71 // pred_check
          %p1079 = pneg %p243
        $region74: #{_bottleneck_pallas.1} parent=71 // pred_check_branch
          %1081 = sbr.rel (%p1079) target = $region76
        $region75: #{_bottleneck_pallas.1} parent=71 // pred_region
          %s1082 = sand.u32 %s228, 1
          %s1083 = scalar_lea.sflag [#allocation5], %s1082
          %s1084 = sand.u32 %s228, 1
          %s1085 = smul.addr %s1084, 32
          %s1086 = scalar_lea.vmem [#allocation8], %s1085
          %1087 = dma.done %s1083, 512
        $region76: #{_bottleneck_pallas.1} parent=71 // pred_fallthru
          _
      $region72: #{_bottleneck_pallas.1} parent=5 // pred_fallthru
        _
    $region6: #{_bottleneck_pallas.1} parent=1 // loop_footer
      %s24 = sadd.s32 1, %s20
    $region7: #{_bottleneck_pallas.1} parent=1 // loop_footer_branch
      %19 = sbr.rel target = $region3
    $region8: #{_bottleneck_pallas.1} parent=1 // loop_exit
      _
    %1088 = vsyncpa [#allocation4], 1
    %s1089 = scalar_lea.sflag [#allocation4], 1
    %1090 = vsyncpa %s1089, 1
    %1091 = vsyncpa [#allocation7], 1
    %1092 = vsyncpa [#allocation5], 1
    %s1093 = scalar_lea.sflag [#allocation5], 1
    %1094 = vsyncpa %s1093, 1

</llo_original>
